<compile_context>
chip_gen: v5e
topology: v5e:2x2
jax: 0.10.0
libtpu: 0.0.40
codegen_flags: <defaults>
</compile_context>

<pallas_src>
import functools

import jax
import jax.numpy as jnp
from jax import lax
from jax.experimental import pallas as pl
from jax.experimental.pallas import tpu as pltpu


# ----------------------------------------------------------------------------
# In-kernel helpers.
# ----------------------------------------------------------------------------
def _conv1x1_fma(w_ref, x, hw):
    """Channel contraction  out[o, p] = sum_k w[k, o] * x[k, p]  on the VPU.

    w_ref has shape (K, n_out, 1); x has shape (K, H*W).  For the tiny K of
    this block (4 / 16) a K-term broadcast-FMA beats a K=4 MXU matmul.
    """
    k_dim, n_out, _ = w_ref.shape
    acc = jnp.zeros((n_out, hw), jnp.float32)
    for k in range(k_dim):                        # static unroll (K is small)
        acc = acc + w_ref[k] * x[k:k + 1, :]      # (n_out,1) * (1,HW) FMA
    return acc


def _mbconv_kernel(*refs, expand, use_residual, W, halo):
    if expand:
        (x_ref, w_exp_ref, b1_ref,
         w_dw_ref, b2_ref,
         w_pw_ref, b3_ref,
         o_ref, pad_ref) = refs
    else:
        (x_ref,
         w_dw_ref, b2_ref,
         w_pw_ref, b3_ref,
         o_ref, pad_ref) = refs

    n, _, hw = x_ref.shape
    hidden = w_dw_ref.shape[1]

    # Zero the halo scratch once; the interior is fully rewritten per image so
    # only the (always-zero) halos matter afterwards.
    pad_ref[...] = jnp.zeros_like(pad_ref)

    # Column masks (lane-index based, computed once): taps with ox = +-1 must
    # not read across a row boundary of the flattened H*W lane axis.  The top
    # and bottom rows (oy = +-1) are handled for free by the zero halo.
    col = lax.broadcasted_iota(jnp.int32, (1, hw), 1) % W
    not_first_col = col > 0           # valid lanes for ox == -1
    not_last_col = col < (W - 1)      # valid lanes for ox == +1

    for img in range(n):                          # static unroll over batch
        x = x_ref[img].astype(jnp.float32)        # (Cin, H*W), lane-dense

        # ---- 1x1 expansion conv (BN1 scale pre-folded) + shift + Swish -----
        if expand:
            a = _conv1x1_fma(w_exp_ref, x, hw) + b1_ref[...]
            a = a * jax.nn.sigmoid(a)
        else:
            a = x

        # ---- depthwise 3x3, stride 1, pad 1 --------------------------------
        # One lane-aligned store into the middle of the zero-halo scratch,
        # then 9 statically shifted reads (+ column masks) accumulate the taps.
        pad_ref[:, halo:halo + hw] = a
        acc = jnp.zeros((hidden, hw), jnp.float32)
        k = 0
        for oy in (-1, 0, 1):
            for ox in (-1, 0, 1):
                s = oy * W + ox
                v = pad_ref[:, halo + s:halo + s + hw]
                if ox == -1:
                    v = jnp.where(not_first_col, v, 0.0)
                elif ox == 1:
                    v = jnp.where(not_last_col, v, 0.0)
                acc = acc + v * w_dw_ref[k]       # (hidden,1) per-channel tap
                k += 1
        a = acc + b2_ref[...]                     # BN2 shift (scale folded)
        a = a * jax.nn.sigmoid(a)                 # Swish

        # ---- 1x1 projection conv (BN3 scale pre-folded) + shift ------------
        y = _conv1x1_fma(w_pw_ref, a, hw) + b3_ref[...]

        if use_residual:
            y = y + x

        o_ref[img] = y.astype(o_ref.dtype)


def _fold_bn(gamma, beta, mean, var, eps=1e-5):
    """BatchNorm (eval mode) -> per-channel (scale, shift)."""
    scale = gamma / jnp.sqrt(var + eps)
    shift = beta - mean * scale
    return scale, shift


# ----------------------------------------------------------------------------
# Wrapper: free NCHW -> (N, C, H*W) reshape + a single fused pallas_call.
# ----------------------------------------------------------------------------
def mbconv_forward(x_nchw, params, *, stride=1):
    if stride != 1:
        # TODO(synk): stride > 1 depthwise subsampling not implemented in the
        # fused kernel (the demo block is the stride=1 residual configuration).
        raise NotImplementedError("fused MBConv kernel supports stride=1 only")

    n, cin, h, w = x_nchw.shape
    hw = h * w
    hidden = params["dw_w"].shape[-1]
    cout = params["project_w"].shape[-1]
    expand = "expand_w" in params
    use_residual = (stride == 1) and (cin == cout)

    # Channels on sublanes, flattened spatial on lanes: a free reshape (no
    # transpose / extra HBM pass), with H*W a multiple of 128 on the lane axis.
    x3 = x_nchw.reshape(n, cin, hw)

    # Fold BN scales directly into the conv weights; keep only the shifts.
    s2, b2 = _fold_bn(*params["bn2"])
    s3, b3 = _fold_bn(*params["bn3"])
    # depthwise: (3, 3, hidden) -> (9, hidden, 1), tap index k = dy*3 + dx.
    w_dw = (params["dw_w"] * s2[None, None, :]).reshape(9, hidden)[..., None]
    # projection: (hidden, cout) -> (hidden, cout, 1);  out[o] = sum_k w[k,o] a[k]
    w_pw = (params["project_w"] * s3[None, :])[..., None]

    args = [x3]
    if expand:
        s1, b1 = _fold_bn(*params["bn1"])
        w_exp = (params["expand_w"] * s1[None, :])[..., None]   # (cin, hidden, 1)
        args += [w_exp, b1[:, None]]
    args += [w_dw, b2[:, None], w_pw, b3[:, None]]

    # Lane-aligned halo (>= W + 1 zeros on each side of the flattened image).
    halo = pl.cdiv(w + 1, 128) * 128

    kernel = functools.partial(_mbconv_kernel, expand=expand,
                               use_residual=use_residual, W=w, halo=halo)

    # Single invocation (grid = ()): default BlockSpecs map every (small)
    # operand and the lane-dense output as whole arrays resident in VMEM.
    out3 = pl.pallas_call(
        kernel,
        out_shape=jax.ShapeDtypeStruct((n, cout, hw), x_nchw.dtype),
        scratch_shapes=[pltpu.VMEM((hidden, hw + 2 * halo), jnp.float32)],
    )(*args)

    return out3.reshape(n, cout, h, w)


# ----------------------------------------------------------------------------
# Parameter init (deterministic) and a pure-JAX reference for validation.
# ----------------------------------------------------------------------------
def init_params(key, in_channels, out_channels, expand_ratio):
    hidden = in_channels * expand_ratio
    ks = jax.random.split(key, 6)

    def bn_params(k, c):
        k1, k2, k3, k4 = jax.random.split(k, 4)
        gamma = jax.random.uniform(k1, (c,), jnp.float32, 0.5, 1.5)
        beta = 0.1 * jax.random.normal(k2, (c,), jnp.float32)
        mean = 0.1 * jax.random.normal(k3, (c,), jnp.float32)
        var = jax.random.uniform(k4, (c,), jnp.float32, 0.5, 1.5)
        return gamma, beta, mean, var

    params = {}
    if expand_ratio != 1:
        sc = 1.0 / (in_channels ** 0.5)
        params["expand_w"] = jax.random.uniform(
            ks[0], (in_channels, hidden), jnp.float32, -sc, sc)
        params["bn1"] = bn_params(ks[1], hidden)
    sc = 1.0 / 3.0                                    # 1/sqrt(1*3*3)
    params["dw_w"] = jax.random.uniform(ks[2], (3, 3, hidden), jnp.float32, -sc, sc)
    params["bn2"] = bn_params(ks[3], hidden)
    sc = 1.0 / (hidden ** 0.5)
    params["project_w"] = jax.random.uniform(
        ks[4], (hidden, out_channels), jnp.float32, -sc, sc)
    params["bn3"] = bn_params(ks[5], out_channels)
    return params


def mbconv_reference(x_nchw, params, *, stride=1, eps=1e-5):
    """Plain-JAX (XLA) MBConvBlock forward in NCHW, for correctness check."""
    def bn(x, p):
        gamma, beta, mean, var = p
        inv = gamma / jnp.sqrt(var + eps)
        return x * inv[None, :, None, None] + (beta - mean * inv)[None, :, None, None]

    def swish(x):
        return x * jax.nn.sigmoid(x)

    cin = x_nchw.shape[1]
    hidden = params["dw_w"].shape[-1]
    cout = params["project_w"].shape[-1]
    use_residual = (stride == 1) and (cin == cout)
    dn = ("NCHW", "OIHW", "NCHW")
    prec = lax.Precision.HIGHEST

    h = x_nchw
    if "expand_w" in params:
        w = params["expand_w"].T.reshape(hidden, cin, 1, 1)
        h = lax.conv_general_dilated(h, w, (1, 1), "VALID",
                                     dimension_numbers=dn, precision=prec)
        h = swish(bn(h, params["bn1"]))
    wdw = jnp.transpose(params["dw_w"], (2, 0, 1)).reshape(hidden, 1, 3, 3)
    h = lax.conv_general_dilated(h, wdw, (stride, stride), [(1, 1), (1, 1)],
                                 dimension_numbers=dn, feature_group_count=hidden,
                                 precision=prec)
    h = swish(bn(h, params["bn2"]))
    wp = params["project_w"].T.reshape(cout, hidden, 1, 1)
    h = lax.conv_general_dilated(h, wp, (1, 1), "VALID",
                                 dimension_numbers=dn, precision=prec)
    h = bn(h, params["bn3"])
    return x_nchw + h if use_residual else h


if __name__ == "__main__":
    key = jax.random.PRNGKey(0)
    k_in, k_par = jax.random.split(key)

    # MBConvBlock(in_channels=4, out_channels=4, expand_ratio=4, stride=1)
    # -> hidden_dim = 16, residual path active.  Input: batch=2, 4 x 16 x 16.
    in_channels, out_channels, expand_ratio, stride = 4, 4, 4, 1
    x = jax.random.normal(k_in, (2, in_channels, 16, 16), jnp.float32)
    params = init_params(k_par, in_channels, out_channels, expand_ratio)

    fwd = jax.jit(mbconv_forward, static_argnames=("stride",))
    out = jax.block_until_ready(fwd(x, params, stride=stride))
    assert out.shape == (2, out_channels, 16, 16), out.shape

    ref = mbconv_reference(x, params, stride=stride)
    err = float(jnp.max(jnp.abs(out - ref)))
    assert err < 5e-4, f"max abs error vs reference: {err}"

    print("KERNEL_OK")
</pallas_src>

<mosaic_0001>
module attributes {stable_mosaic.version = 11 : i64} {
  func.func @_mbconv_kernel(%arg0: memref<2x4x256xf32, #tpu.memory_space<vmem>>, %arg1: memref<4x16x1xf32, #tpu.memory_space<vmem>>, %arg2: memref<16x1xf32, #tpu.memory_space<vmem>>, %arg3: memref<9x16x1xf32, #tpu.memory_space<vmem>>, %arg4: memref<16x1xf32, #tpu.memory_space<vmem>>, %arg5: memref<16x4x1xf32, #tpu.memory_space<vmem>>, %arg6: memref<4x1xf32, #tpu.memory_space<vmem>>, %arg7: memref<2x4x256xf32, #tpu.memory_space<vmem>>, %arg8: memref<16x512xf32, #tpu.memory_space<vmem>>) attributes {dimension_semantics = [], scalar_prefetch = 0 : i64, scratch_operands = 1 : i64, tpu.core_type = #tpu.core_type<tc>} {
    %cst = arith.constant 0.000000e+00 : f32
    %0 = vector.broadcast %cst : f32 to vector<16x512xf32>
    %c0 = arith.constant 0 : index
    %c0_0 = arith.constant 0 : index
    %1 = vector.load %arg8[%c0, %c0_0] : memref<16x512xf32, #tpu.memory_space<vmem>>, vector<16x512xf32>
    tpu.vector_store %arg8[%c0, %c0_0], %0 {strides = array<i32>} : memref<16x512xf32, #tpu.memory_space<vmem>>, vector<16x512xf32>,
    %2 = tpu.iota {dimensions = array<i32: 1>} : vector<1x256xi32>
    %c16_i32 = arith.constant 16 : i32
    %c0_i32 = arith.constant 0 : i32
    %3 = arith.cmpi eq, %c16_i32, %c0_i32 : i32
    %c1_i32 = arith.constant 1 : i32
    %4 = arith.select %3, %c1_i32, %c16_i32 : i32
    %5 = vector.broadcast %4 : i32 to vector<1x256xi32>
    %6 = arith.remsi %2, %5 : vector<1x256xi32>
    %c0_i32_1 = arith.constant 0 : i32
    %7 = vector.broadcast %c0_i32_1 : i32 to vector<1x256xi32>
    %8 = arith.cmpi ne, %6, %7 : vector<1x256xi32>
    %c0_i32_2 = arith.constant 0 : i32
    %9 = vector.broadcast %c0_i32_2 : i32 to vector<1x256xi32>
    %10 = arith.cmpi slt, %6, %9 : vector<1x256xi32>
    %c0_i32_3 = arith.constant 0 : i32
    %11 = arith.cmpi slt, %4, %c0_i32_3 : i32
    %12 = vector.broadcast %11 : i1 to vector<1x256xi1>
    %13 = vector.broadcast %12 : vector<1x256xi1> to vector<1x256xi1>
    %14 = arith.xori %10, %13 : vector<1x256xi1>
    %15 = arith.andi %14, %8 : vector<1x256xi1>
    %16 = vector.broadcast %4 : i32 to vector<1x256xi32>
    %17 = arith.addi %6, %16 : vector<1x256xi32>
    %18 = arith.select %15, %17, %6 : vector<1x256xi1>, vector<1x256xi32>
    %c0_i32_4 = arith.constant 0 : i32
    %19 = vector.broadcast %c0_i32_4 : i32 to vector<1x256xi32>
    %20 = arith.cmpi sgt, %18, %19 : vector<1x256xi32>
    %c15_i32 = arith.constant 15 : i32
    %21 = vector.broadcast %c15_i32 : i32 to vector<1x256xi32>
    %22 = arith.cmpi slt, %18, %21 : vector<1x256xi32>
    %c0_5 = arith.constant 0 : index
    %c0_6 = arith.constant 0 : index
    %c0_7 = arith.constant 0 : index
    %23 = vector.load %arg0[%c0_5, %c0_6, %c0_7] : memref<2x4x256xf32, #tpu.memory_space<vmem>>, vector<1x4x256xf32>
    %24 = vector.shape_cast %23 : vector<1x4x256xf32> to vector<4x256xf32>
    %cst_8 = arith.constant 0.000000e+00 : f32
    %25 = vector.broadcast %cst_8 : f32 to vector<16x256xf32>
    %c0_9 = arith.constant 0 : index
    %c0_10 = arith.constant 0 : index
    %c0_11 = arith.constant 0 : index
    %26 = vector.load %arg1[%c0_9, %c0_10, %c0_11] : memref<4x16x1xf32, #tpu.memory_space<vmem>>, vector<1x16x1xf32>
    %27 = vector.shape_cast %26 : vector<1x16x1xf32> to vector<16x1xf32>
    %28 = vector.extract_strided_slice %24 {offsets = [0, 0], sizes = [1, 256], strides = [1, 1]} : vector<4x256xf32> to vector<1x256xf32>
    %29 = vector.broadcast %27 : vector<16x1xf32> to vector<16x256xf32>
    %30 = vector.broadcast %28 : vector<1x256xf32> to vector<16x256xf32>
    %31 = arith.mulf %29, %30 : vector<16x256xf32>
    %32 = arith.addf %25, %31 : vector<16x256xf32>
    %c1 = arith.constant 1 : index
    %c0_12 = arith.constant 0 : index
    %c0_13 = arith.constant 0 : index
    %33 = vector.load %arg1[%c1, %c0_12, %c0_13] : memref<4x16x1xf32, #tpu.memory_space<vmem>>, vector<1x16x1xf32>
    %34 = vector.shape_cast %33 : vector<1x16x1xf32> to vector<16x1xf32>
    %35 = vector.extract_strided_slice %24 {offsets = [1, 0], sizes = [1, 256], strides = [1, 1]} : vector<4x256xf32> to vector<1x256xf32>
    %36 = vector.broadcast %34 : vector<16x1xf32> to vector<16x256xf32>
    %37 = vector.broadcast %35 : vector<1x256xf32> to vector<16x256xf32>
    %38 = arith.mulf %36, %37 : vector<16x256xf32>
    %39 = arith.addf %32, %38 : vector<16x256xf32>
    %c2 = arith.constant 2 : index
    %c0_14 = arith.constant 0 : index
    %c0_15 = arith.constant 0 : index
    %40 = vector.load %arg1[%c2, %c0_14, %c0_15] : memref<4x16x1xf32, #tpu.memory_space<vmem>>, vector<1x16x1xf32>
    %41 = vector.shape_cast %40 : vector<1x16x1xf32> to vector<16x1xf32>
    %42 = vector.extract_strided_slice %24 {offsets = [2, 0], sizes = [1, 256], strides = [1, 1]} : vector<4x256xf32> to vector<1x256xf32>
    %43 = vector.broadcast %41 : vector<16x1xf32> to vector<16x256xf32>
    %44 = vector.broadcast %42 : vector<1x256xf32> to vector<16x256xf32>
    %45 = arith.mulf %43, %44 : vector<16x256xf32>
    %46 = arith.addf %39, %45 : vector<16x256xf32>
    %c3 = arith.constant 3 : index
    %c0_16 = arith.constant 0 : index
    %c0_17 = arith.constant 0 : index
    %47 = vector.load %arg1[%c3, %c0_16, %c0_17] : memref<4x16x1xf32, #tpu.memory_space<vmem>>, vector<1x16x1xf32>
    %48 = vector.shape_cast %47 : vector<1x16x1xf32> to vector<16x1xf32>
    %49 = vector.extract_strided_slice %24 {offsets = [3, 0], sizes = [1, 256], strides = [1, 1]} : vector<4x256xf32> to vector<1x256xf32>
    %50 = vector.broadcast %48 : vector<16x1xf32> to vector<16x256xf32>
    %51 = vector.broadcast %49 : vector<1x256xf32> to vector<16x256xf32>
    %52 = arith.mulf %50, %51 : vector<16x256xf32>
    %53 = arith.addf %46, %52 : vector<16x256xf32>
    %c0_18 = arith.constant 0 : index
    %c0_19 = arith.constant 0 : index
    %54 = vector.load %arg2[%c0_18, %c0_19] : memref<16x1xf32, #tpu.memory_space<vmem>>, vector<16x1xf32>
    %55 = vector.broadcast %54 : vector<16x1xf32> to vector<16x256xf32>
    %56 = arith.addf %53, %55 : vector<16x256xf32>
    %57 = arith.negf %56 : vector<16x256xf32>
    %58 = math.exp %57 : vector<16x256xf32>
    %cst_20 = arith.constant 1.000000e+00 : f32
    %59 = vector.broadcast %cst_20 : f32 to vector<16x256xf32>
    %60 = arith.addf %59, %58 : vector<16x256xf32>
    %61 = arith.divf %59, %60 : vector<16x256xf32>
    %62 = arith.mulf %56, %61 : vector<16x256xf32>
    %c0_21 = arith.constant 0 : index
    %c128 = arith.constant 128 : index
    %63 = vector.load %arg8[%c0_21, %c128] : memref<16x512xf32, #tpu.memory_space<vmem>>, vector<16x256xf32>
    tpu.vector_store %arg8[%c0_21, %c128], %62 {strides = array<i32>} : memref<16x512xf32, #tpu.memory_space<vmem>>, vector<16x256xf32>,
    %cst_22 = arith.constant 0.000000e+00 : f32
    %64 = vector.broadcast %cst_22 : f32 to vector<16x256xf32>
    %c0_23 = arith.constant 0 : index
    %c111 = arith.constant 111 : index
    %65 = vector.load %arg8[%c0_23, %c111] : memref<16x512xf32, #tpu.memory_space<vmem>>, vector<16x256xf32>
    %cst_24 = arith.constant 0.000000e+00 : f32
    %66 = vector.shape_cast %20 : vector<1x256xi1> to vector<1x256xi1>
    %67 = vector.broadcast %66 : vector<1x256xi1> to vector<16x256xi1>
    %68 = vector.broadcast %cst_24 : f32 to vector<16x256xf32>
    %69 = arith.select %67, %65, %68 : vector<16x256xi1>, vector<16x256xf32>
    %c0_25 = arith.constant 0 : index
    %c0_26 = arith.constant 0 : index
    %c0_27 = arith.constant 0 : index
    %70 = vector.load %arg3[%c0_25, %c0_26, %c0_27] : memref<9x16x1xf32, #tpu.memory_space<vmem>>, vector<1x16x1xf32>
    %71 = vector.shape_cast %70 : vector<1x16x1xf32> to vector<16x1xf32>
    %72 = vector.broadcast %71 : vector<16x1xf32> to vector<16x256xf32>
    %73 = arith.mulf %69, %72 : vector<16x256xf32>
    %74 = arith.addf %64, %73 : vector<16x256xf32>
    %c0_28 = arith.constant 0 : index
    %c112 = arith.constant 112 : index
    %75 = vector.load %arg8[%c0_28, %c112] : memref<16x512xf32, #tpu.memory_space<vmem>>, vector<16x256xf32>
    %c1_29 = arith.constant 1 : index
    %c0_30 = arith.constant 0 : index
    %c0_31 = arith.constant 0 : index
    %76 = vector.load %arg3[%c1_29, %c0_30, %c0_31] : memref<9x16x1xf32, #tpu.memory_space<vmem>>, vector<1x16x1xf32>
    %77 = vector.shape_cast %76 : vector<1x16x1xf32> to vector<16x1xf32>
    %78 = vector.broadcast %77 : vector<16x1xf32> to vector<16x256xf32>
    %79 = arith.mulf %75, %78 : vector<16x256xf32>
    %80 = arith.addf %74, %79 : vector<16x256xf32>
    %c0_32 = arith.constant 0 : index
    %c113 = arith.constant 113 : index
    %81 = vector.load %arg8[%c0_32, %c113] : memref<16x512xf32, #tpu.memory_space<vmem>>, vector<16x256xf32>
    %cst_33 = arith.constant 0.000000e+00 : f32
    %82 = vector.shape_cast %22 : vector<1x256xi1> to vector<1x256xi1>
    %83 = vector.broadcast %82 : vector<1x256xi1> to vector<16x256xi1>
    %84 = vector.broadcast %cst_33 : f32 to vector<16x256xf32>
    %85 = arith.select %83, %81, %84 : vector<16x256xi1>, vector<16x256xf32>
    %c2_34 = arith.constant 2 : index
    %c0_35 = arith.constant 0 : index
    %c0_36 = arith.constant 0 : index
    %86 = vector.load %arg3[%c2_34, %c0_35, %c0_36] : memref<9x16x1xf32, #tpu.memory_space<vmem>>, vector<1x16x1xf32>
    %87 = vector.shape_cast %86 : vector<1x16x1xf32> to vector<16x1xf32>
    %88 = vector.broadcast %87 : vector<16x1xf32> to vector<16x256xf32>
    %89 = arith.mulf %85, %88 : vector<16x256xf32>
    %90 = arith.addf %80, %89 : vector<16x256xf32>
    %c0_37 = arith.constant 0 : index
    %c127 = arith.constant 127 : index
    %91 = vector.load %arg8[%c0_37, %c127] : memref<16x512xf32, #tpu.memory_space<vmem>>, vector<16x256xf32>
    %cst_38 = arith.constant 0.000000e+00 : f32
    %92 = vector.shape_cast %20 : vector<1x256xi1> to vector<1x256xi1>
    %93 = vector.broadcast %92 : vector<1x256xi1> to vector<16x256xi1>
    %94 = vector.broadcast %cst_38 : f32 to vector<16x256xf32>
    %95 = arith.select %93, %91, %94 : vector<16x256xi1>, vector<16x256xf32>
    %c3_39 = arith.constant 3 : index
    %c0_40 = arith.constant 0 : index
    %c0_41 = arith.constant 0 : index
    %96 = vector.load %arg3[%c3_39, %c0_40, %c0_41] : memref<9x16x1xf32, #tpu.memory_space<vmem>>, vector<1x16x1xf32>
    %97 = vector.shape_cast %96 : vector<1x16x1xf32> to vector<16x1xf32>
    %98 = vector.broadcast %97 : vector<16x1xf32> to vector<16x256xf32>
    %99 = arith.mulf %95, %98 : vector<16x256xf32>
    %100 = arith.addf %90, %99 : vector<16x256xf32>
    %c0_42 = arith.constant 0 : index
    %c128_43 = arith.constant 128 : index
    %101 = vector.load %arg8[%c0_42, %c128_43] : memref<16x512xf32, #tpu.memory_space<vmem>>, vector<16x256xf32>
    %c4 = arith.constant 4 : index
    %c0_44 = arith.constant 0 : index
    %c0_45 = arith.constant 0 : index
    %102 = vector.load %arg3[%c4, %c0_44, %c0_45] : memref<9x16x1xf32, #tpu.memory_space<vmem>>, vector<1x16x1xf32>
    %103 = vector.shape_cast %102 : vector<1x16x1xf32> to vector<16x1xf32>
    %104 = vector.broadcast %103 : vector<16x1xf32> to vector<16x256xf32>
    %105 = arith.mulf %101, %104 : vector<16x256xf32>
    %106 = arith.addf %100, %105 : vector<16x256xf32>
    %c0_46 = arith.constant 0 : index
    %c129 = arith.constant 129 : index
    %107 = vector.load %arg8[%c0_46, %c129] : memref<16x512xf32, #tpu.memory_space<vmem>>, vector<16x256xf32>
    %cst_47 = arith.constant 0.000000e+00 : f32
    %108 = vector.shape_cast %22 : vector<1x256xi1> to vector<1x256xi1>
    %109 = vector.broadcast %108 : vector<1x256xi1> to vector<16x256xi1>
    %110 = vector.broadcast %cst_47 : f32 to vector<16x256xf32>
    %111 = arith.select %109, %107, %110 : vector<16x256xi1>, vector<16x256xf32>
    %c5 = arith.constant 5 : index
    %c0_48 = arith.constant 0 : index
    %c0_49 = arith.constant 0 : index
    %112 = vector.load %arg3[%c5, %c0_48, %c0_49] : memref<9x16x1xf32, #tpu.memory_space<vmem>>, vector<1x16x1xf32>
    %113 = vector.shape_cast %112 : vector<1x16x1xf32> to vector<16x1xf32>
    %114 = vector.broadcast %113 : vector<16x1xf32> to vector<16x256xf32>
    %115 = arith.mulf %111, %114 : vector<16x256xf32>
    %116 = arith.addf %106, %115 : vector<16x256xf32>
    %c0_50 = arith.constant 0 : index
    %c143 = arith.constant 143 : index
    %117 = vector.load %arg8[%c0_50, %c143] : memref<16x512xf32, #tpu.memory_space<vmem>>, vector<16x256xf32>
    %cst_51 = arith.constant 0.000000e+00 : f32
    %118 = vector.shape_cast %20 : vector<1x256xi1> to vector<1x256xi1>
    %119 = vector.broadcast %118 : vector<1x256xi1> to vector<16x256xi1>
    %120 = vector.broadcast %cst_51 : f32 to vector<16x256xf32>
    %121 = arith.select %119, %117, %120 : vector<16x256xi1>, vector<16x256xf32>
    %c6 = arith.constant 6 : index
    %c0_52 = arith.constant 0 : index
    %c0_53 = arith.constant 0 : index
    %122 = vector.load %arg3[%c6, %c0_52, %c0_53] : memref<9x16x1xf32, #tpu.memory_space<vmem>>, vector<1x16x1xf32>
    %123 = vector.shape_cast %122 : vector<1x16x1xf32> to vector<16x1xf32>
    %124 = vector.broadcast %123 : vector<16x1xf32> to vector<16x256xf32>
    %125 = arith.mulf %121, %124 : vector<16x256xf32>
    %126 = arith.addf %116, %125 : vector<16x256xf32>
    %c0_54 = arith.constant 0 : index
    %c144 = arith.constant 144 : index
    %127 = vector.load %arg8[%c0_54, %c144] : memref<16x512xf32, #tpu.memory_space<vmem>>, vector<16x256xf32>
    %c7 = arith.constant 7 : index
    %c0_55 = arith.constant 0 : index
    %c0_56 = arith.constant 0 : index
    %128 = vector.load %arg3[%c7, %c0_55, %c0_56] : memref<9x16x1xf32, #tpu.memory_space<vmem>>, vector<1x16x1xf32>
    %129 = vector.shape_cast %128 : vector<1x16x1xf32> to vector<16x1xf32>
    %130 = vector.broadcast %129 : vector<16x1xf32> to vector<16x256xf32>
    %131 = arith.mulf %127, %130 : vector<16x256xf32>
    %132 = arith.addf %126, %131 : vector<16x256xf32>
    %c0_57 = arith.constant 0 : index
    %c145 = arith.constant 145 : index
    %133 = vector.load %arg8[%c0_57, %c145] : memref<16x512xf32, #tpu.memory_space<vmem>>, vector<16x256xf32>
    %cst_58 = arith.constant 0.000000e+00 : f32
    %134 = vector.shape_cast %22 : vector<1x256xi1> to vector<1x256xi1>
    %135 = vector.broadcast %134 : vector<1x256xi1> to vector<16x256xi1>
    %136 = vector.broadcast %cst_58 : f32 to vector<16x256xf32>
    %137 = arith.select %135, %133, %136 : vector<16x256xi1>, vector<16x256xf32>
    %c8 = arith.constant 8 : index
    %c0_59 = arith.constant 0 : index
    %c0_60 = arith.constant 0 : index
    %138 = vector.load %arg3[%c8, %c0_59, %c0_60] : memref<9x16x1xf32, #tpu.memory_space<vmem>>, vector<1x16x1xf32>
    %139 = vector.shape_cast %138 : vector<1x16x1xf32> to vector<16x1xf32>
    %140 = vector.broadcast %139 : vector<16x1xf32> to vector<16x256xf32>
    %141 = arith.mulf %137, %140 : vector<16x256xf32>
    %142 = arith.addf %132, %141 : vector<16x256xf32>
    %c0_61 = arith.constant 0 : index
    %c0_62 = arith.constant 0 : index
    %143 = vector.load %arg4[%c0_61, %c0_62] : memref<16x1xf32, #tpu.memory_space<vmem>>, vector<16x1xf32>
    %144 = vector.broadcast %143 : vector<16x1xf32> to vector<16x256xf32>
    %145 = arith.addf %142, %144 : vector<16x256xf32>
    %146 = arith.negf %145 : vector<16x256xf32>
    %147 = math.exp %146 : vector<16x256xf32>
    %cst_63 = arith.constant 1.000000e+00 : f32
    %148 = vector.broadcast %cst_63 : f32 to vector<16x256xf32>
    %149 = arith.addf %148, %147 : vector<16x256xf32>
    %150 = arith.divf %148, %149 : vector<16x256xf32>
    %151 = arith.mulf %145, %150 : vector<16x256xf32>
    %cst_64 = arith.constant 0.000000e+00 : f32
    %152 = vector.broadcast %cst_64 : f32 to vector<4x256xf32>
    %c0_65 = arith.constant 0 : index
    %c0_66 = arith.constant 0 : index
    %c0_67 = arith.constant 0 : index
    %153 = vector.load %arg5[%c0_65, %c0_66, %c0_67] : memref<16x4x1xf32, #tpu.memory_space<vmem>>, vector<1x4x1xf32>
    %154 = vector.shape_cast %153 : vector<1x4x1xf32> to vector<4x1xf32>
    %155 = vector.extract_strided_slice %151 {offsets = [0, 0], sizes = [1, 256], strides = [1, 1]} : vector<16x256xf32> to vector<1x256xf32>
    %156 = vector.broadcast %154 : vector<4x1xf32> to vector<4x256xf32>
    %157 = vector.broadcast %155 : vector<1x256xf32> to vector<4x256xf32>
    %158 = arith.mulf %156, %157 : vector<4x256xf32>
    %159 = arith.addf %152, %158 : vector<4x256xf32>
    %c1_68 = arith.constant 1 : index
    %c0_69 = arith.constant 0 : index
    %c0_70 = arith.constant 0 : index
    %160 = vector.load %arg5[%c1_68, %c0_69, %c0_70] : memref<16x4x1xf32, #tpu.memory_space<vmem>>, vector<1x4x1xf32>
    %161 = vector.shape_cast %160 : vector<1x4x1xf32> to vector<4x1xf32>
    %162 = vector.extract_strided_slice %151 {offsets = [1, 0], sizes = [1, 256], strides = [1, 1]} : vector<16x256xf32> to vector<1x256xf32>
    %163 = vector.broadcast %161 : vector<4x1xf32> to vector<4x256xf32>
    %164 = vector.broadcast %162 : vector<1x256xf32> to vector<4x256xf32>
    %165 = arith.mulf %163, %164 : vector<4x256xf32>
    %166 = arith.addf %159, %165 : vector<4x256xf32>
    %c2_71 = arith.constant 2 : index
    %c0_72 = arith.constant 0 : index
    %c0_73 = arith.constant 0 : index
    %167 = vector.load %arg5[%c2_71, %c0_72, %c0_73] : memref<16x4x1xf32, #tpu.memory_space<vmem>>, vector<1x4x1xf32>
    %168 = vector.shape_cast %167 : vector<1x4x1xf32> to vector<4x1xf32>
    %169 = vector.extract_strided_slice %151 {offsets = [2, 0], sizes = [1, 256], strides = [1, 1]} : vector<16x256xf32> to vector<1x256xf32>
    %170 = vector.broadcast %168 : vector<4x1xf32> to vector<4x256xf32>
    %171 = vector.broadcast %169 : vector<1x256xf32> to vector<4x256xf32>
    %172 = arith.mulf %170, %171 : vector<4x256xf32>
    %173 = arith.addf %166, %172 : vector<4x256xf32>
    %c3_74 = arith.constant 3 : index
    %c0_75 = arith.constant 0 : index
    %c0_76 = arith.constant 0 : index
    %174 = vector.load %arg5[%c3_74, %c0_75, %c0_76] : memref<16x4x1xf32, #tpu.memory_space<vmem>>, vector<1x4x1xf32>
    %175 = vector.shape_cast %174 : vector<1x4x1xf32> to vector<4x1xf32>
    %176 = vector.extract_strided_slice %151 {offsets = [3, 0], sizes = [1, 256], strides = [1, 1]} : vector<16x256xf32> to vector<1x256xf32>
    %177 = vector.broadcast %175 : vector<4x1xf32> to vector<4x256xf32>
    %178 = vector.broadcast %176 : vector<1x256xf32> to vector<4x256xf32>
    %179 = arith.mulf %177, %178 : vector<4x256xf32>
    %180 = arith.addf %173, %179 : vector<4x256xf32>
    %c4_77 = arith.constant 4 : index
    %c0_78 = arith.constant 0 : index
    %c0_79 = arith.constant 0 : index
    %181 = vector.load %arg5[%c4_77, %c0_78, %c0_79] : memref<16x4x1xf32, #tpu.memory_space<vmem>>, vector<1x4x1xf32>
    %182 = vector.shape_cast %181 : vector<1x4x1xf32> to vector<4x1xf32>
    %183 = vector.extract_strided_slice %151 {offsets = [4, 0], sizes = [1, 256], strides = [1, 1]} : vector<16x256xf32> to vector<1x256xf32>
    %184 = vector.broadcast %182 : vector<4x1xf32> to vector<4x256xf32>
    %185 = vector.broadcast %183 : vector<1x256xf32> to vector<4x256xf32>
    %186 = arith.mulf %184, %185 : vector<4x256xf32>
    %187 = arith.addf %180, %186 : vector<4x256xf32>
    %c5_80 = arith.constant 5 : index
    %c0_81 = arith.constant 0 : index
    %c0_82 = arith.constant 0 : index
    %188 = vector.load %arg5[%c5_80, %c0_81, %c0_82] : memref<16x4x1xf32, #tpu.memory_space<vmem>>, vector<1x4x1xf32>
    %189 = vector.shape_cast %188 : vector<1x4x1xf32> to vector<4x1xf32>
    %190 = vector.extract_strided_slice %151 {offsets = [5, 0], sizes = [1, 256], strides = [1, 1]} : vector<16x256xf32> to vector<1x256xf32>
    %191 = vector.broadcast %189 : vector<4x1xf32> to vector<4x256xf32>
    %192 = vector.broadcast %190 : vector<1x256xf32> to vector<4x256xf32>
    %193 = arith.mulf %191, %192 : vector<4x256xf32>
    %194 = arith.addf %187, %193 : vector<4x256xf32>
    %c6_83 = arith.constant 6 : index
    %c0_84 = arith.constant 0 : index
    %c0_85 = arith.constant 0 : index
    %195 = vector.load %arg5[%c6_83, %c0_84, %c0_85] : memref<16x4x1xf32, #tpu.memory_space<vmem>>, vector<1x4x1xf32>
    %196 = vector.shape_cast %195 : vector<1x4x1xf32> to vector<4x1xf32>
    %197 = vector.extract_strided_slice %151 {offsets = [6, 0], sizes = [1, 256], strides = [1, 1]} : vector<16x256xf32> to vector<1x256xf32>
    %198 = vector.broadcast %196 : vector<4x1xf32> to vector<4x256xf32>
    %199 = vector.broadcast %197 : vector<1x256xf32> to vector<4x256xf32>
    %200 = arith.mulf %198, %199 : vector<4x256xf32>
    %201 = arith.addf %194, %200 : vector<4x256xf32>
    %c7_86 = arith.constant 7 : index
    %c0_87 = arith.constant 0 : index
    %c0_88 = arith.constant 0 : index
    %202 = vector.load %arg5[%c7_86, %c0_87, %c0_88] : memref<16x4x1xf32, #tpu.memory_space<vmem>>, vector<1x4x1xf32>
    %203 = vector.shape_cast %202 : vector<1x4x1xf32> to vector<4x1xf32>
    %204 = vector.extract_strided_slice %151 {offsets = [7, 0], sizes = [1, 256], strides = [1, 1]} : vector<16x256xf32> to vector<1x256xf32>
    %205 = vector.broadcast %203 : vector<4x1xf32> to vector<4x256xf32>
    %206 = vector.broadcast %204 : vector<1x256xf32> to vector<4x256xf32>
    %207 = arith.mulf %205, %206 : vector<4x256xf32>
    %208 = arith.addf %201, %207 : vector<4x256xf32>
    %c8_89 = arith.constant 8 : index
    %c0_90 = arith.constant 0 : index
    %c0_91 = arith.constant 0 : index
    %209 = vector.load %arg5[%c8_89, %c0_90, %c0_91] : memref<16x4x1xf32, #tpu.memory_space<vmem>>, vector<1x4x1xf32>
    %210 = vector.shape_cast %209 : vector<1x4x1xf32> to vector<4x1xf32>
    %211 = vector.extract_strided_slice %151 {offsets = [8, 0], sizes = [1, 256], strides = [1, 1]} : vector<16x256xf32> to vector<1x256xf32>
    %212 = vector.broadcast %210 : vector<4x1xf32> to vector<4x256xf32>
    %213 = vector.broadcast %211 : vector<1x256xf32> to vector<4x256xf32>
    %214 = arith.mulf %212, %213 : vector<4x256xf32>
    %215 = arith.addf %208, %214 : vector<4x256xf32>
    %c9 = arith.constant 9 : index
    %c0_92 = arith.constant 0 : index
    %c0_93 = arith.constant 0 : index
    %216 = vector.load %arg5[%c9, %c0_92, %c0_93] : memref<16x4x1xf32, #tpu.memory_space<vmem>>, vector<1x4x1xf32>
    %217 = vector.shape_cast %216 : vector<1x4x1xf32> to vector<4x1xf32>
    %218 = vector.extract_strided_slice %151 {offsets = [9, 0], sizes = [1, 256], strides = [1, 1]} : vector<16x256xf32> to vector<1x256xf32>
    %219 = vector.broadcast %217 : vector<4x1xf32> to vector<4x256xf32>
    %220 = vector.broadcast %218 : vector<1x256xf32> to vector<4x256xf32>
    %221 = arith.mulf %219, %220 : vector<4x256xf32>
    %222 = arith.addf %215, %221 : vector<4x256xf32>
    %c10 = arith.constant 10 : index
    %c0_94 = arith.constant 0 : index
    %c0_95 = arith.constant 0 : index
    %223 = vector.load %arg5[%c10, %c0_94, %c0_95] : memref<16x4x1xf32, #tpu.memory_space<vmem>>, vector<1x4x1xf32>
    %224 = vector.shape_cast %223 : vector<1x4x1xf32> to vector<4x1xf32>
    %225 = vector.extract_strided_slice %151 {offsets = [10, 0], sizes = [1, 256], strides = [1, 1]} : vector<16x256xf32> to vector<1x256xf32>
    %226 = vector.broadcast %224 : vector<4x1xf32> to vector<4x256xf32>
    %227 = vector.broadcast %225 : vector<1x256xf32> to vector<4x256xf32>
    %228 = arith.mulf %226, %227 : vector<4x256xf32>
    %229 = arith.addf %222, %228 : vector<4x256xf32>
    %c11 = arith.constant 11 : index
    %c0_96 = arith.constant 0 : index
    %c0_97 = arith.constant 0 : index
    %230 = vector.load %arg5[%c11, %c0_96, %c0_97] : memref<16x4x1xf32, #tpu.memory_space<vmem>>, vector<1x4x1xf32>
    %231 = vector.shape_cast %230 : vector<1x4x1xf32> to vector<4x1xf32>
    %232 = vector.extract_strided_slice %151 {offsets = [11, 0], sizes = [1, 256], strides = [1, 1]} : vector<16x256xf32> to vector<1x256xf32>
    %233 = vector.broadcast %231 : vector<4x1xf32> to vector<4x256xf32>
    %234 = vector.broadcast %232 : vector<1x256xf32> to vector<4x256xf32>
    %235 = arith.mulf %233, %234 : vector<4x256xf32>
    %236 = arith.addf %229, %235 : vector<4x256xf32>
    %c12 = arith.constant 12 : index
    %c0_98 = arith.constant 0 : index
    %c0_99 = arith.constant 0 : index
    %237 = vector.load %arg5[%c12, %c0_98, %c0_99] : memref<16x4x1xf32, #tpu.memory_space<vmem>>, vector<1x4x1xf32>
    %238 = vector.shape_cast %237 : vector<1x4x1xf32> to vector<4x1xf32>
    %239 = vector.extract_strided_slice %151 {offsets = [12, 0], sizes = [1, 256], strides = [1, 1]} : vector<16x256xf32> to vector<1x256xf32>
    %240 = vector.broadcast %238 : vector<4x1xf32> to vector<4x256xf32>
    %241 = vector.broadcast %239 : vector<1x256xf32> to vector<4x256xf32>
    %242 = arith.mulf %240, %241 : vector<4x256xf32>
    %243 = arith.addf %236, %242 : vector<4x256xf32>
    %c13 = arith.constant 13 : index
    %c0_100 = arith.constant 0 : index
    %c0_101 = arith.constant 0 : index
    %244 = vector.load %arg5[%c13, %c0_100, %c0_101] : memref<16x4x1xf32, #tpu.memory_space<vmem>>, vector<1x4x1xf32>
    %245 = vector.shape_cast %244 : vector<1x4x1xf32> to vector<4x1xf32>
    %246 = vector.extract_strided_slice %151 {offsets = [13, 0], sizes = [1, 256], strides = [1, 1]} : vector<16x256xf32> to vector<1x256xf32>
    %247 = vector.broadcast %245 : vector<4x1xf32> to vector<4x256xf32>
    %248 = vector.broadcast %246 : vector<1x256xf32> to vector<4x256xf32>
    %249 = arith.mulf %247, %248 : vector<4x256xf32>
    %250 = arith.addf %243, %249 : vector<4x256xf32>
    %c14 = arith.constant 14 : index
    %c0_102 = arith.constant 0 : index
    %c0_103 = arith.constant 0 : index
    %251 = vector.load %arg5[%c14, %c0_102, %c0_103] : memref<16x4x1xf32, #tpu.memory_space<vmem>>, vector<1x4x1xf32>
    %252 = vector.shape_cast %251 : vector<1x4x1xf32> to vector<4x1xf32>
    %253 = vector.extract_strided_slice %151 {offsets = [14, 0], sizes = [1, 256], strides = [1, 1]} : vector<16x256xf32> to vector<1x256xf32>
    %254 = vector.broadcast %252 : vector<4x1xf32> to vector<4x256xf32>
    %255 = vector.broadcast %253 : vector<1x256xf32> to vector<4x256xf32>
    %256 = arith.mulf %254, %255 : vector<4x256xf32>
    %257 = arith.addf %250, %256 : vector<4x256xf32>
    %c15 = arith.constant 15 : index
    %c0_104 = arith.constant 0 : index
    %c0_105 = arith.constant 0 : index
    %258 = vector.load %arg5[%c15, %c0_104, %c0_105] : memref<16x4x1xf32, #tpu.memory_space<vmem>>, vector<1x4x1xf32>
    %259 = vector.shape_cast %258 : vector<1x4x1xf32> to vector<4x1xf32>
    %260 = vector.extract_strided_slice %151 {offsets = [15, 0], sizes = [1, 256], strides = [1, 1]} : vector<16x256xf32> to vector<1x256xf32>
    %261 = vector.broadcast %259 : vector<4x1xf32> to vector<4x256xf32>
    %262 = vector.broadcast %260 : vector<1x256xf32> to vector<4x256xf32>
    %263 = arith.mulf %261, %262 : vector<4x256xf32>
    %264 = arith.addf %257, %263 : vector<4x256xf32>
    %c0_106 = arith.constant 0 : index
    %c0_107 = arith.constant 0 : index
    %265 = vector.load %arg6[%c0_106, %c0_107] : memref<4x1xf32, #tpu.memory_space<vmem>>, vector<4x1xf32>
    %266 = vector.broadcast %265 : vector<4x1xf32> to vector<4x256xf32>
    %267 = arith.addf %264, %266 : vector<4x256xf32>
    %268 = arith.addf %267, %24 : vector<4x256xf32>
    %c0_108 = arith.constant 0 : index
    %c0_109 = arith.constant 0 : index
    %c0_110 = arith.constant 0 : index
    %269 = vector.load %arg7[%c0_108, %c0_109, %c0_110] : memref<2x4x256xf32, #tpu.memory_space<vmem>>, vector<1x4x256xf32>
    %270 = vector.shape_cast %269 : vector<1x4x256xf32> to vector<4x256xf32>
    %271 = vector.shape_cast %268 : vector<4x256xf32> to vector<1x4x256xf32>
    tpu.vector_store %arg7[%c0_108, %c0_109, %c0_110], %271 {strides = array<i32>} : memref<2x4x256xf32, #tpu.memory_space<vmem>>, vector<1x4x256xf32>,
    %c1_111 = arith.constant 1 : index
    %c0_112 = arith.constant 0 : index
    %c0_113 = arith.constant 0 : index
    %272 = vector.load %arg0[%c1_111, %c0_112, %c0_113] : memref<2x4x256xf32, #tpu.memory_space<vmem>>, vector<1x4x256xf32>
    %273 = vector.shape_cast %272 : vector<1x4x256xf32> to vector<4x256xf32>
    %cst_114 = arith.constant 0.000000e+00 : f32
    %274 = vector.broadcast %cst_114 : f32 to vector<16x256xf32>
    %c0_115 = arith.constant 0 : index
    %c0_116 = arith.constant 0 : index
    %c0_117 = arith.constant 0 : index
    %275 = vector.load %arg1[%c0_115, %c0_116, %c0_117] : memref<4x16x1xf32, #tpu.memory_space<vmem>>, vector<1x16x1xf32>
    %276 = vector.shape_cast %275 : vector<1x16x1xf32> to vector<16x1xf32>
    %277 = vector.extract_strided_slice %273 {offsets = [0, 0], sizes = [1, 256], strides = [1, 1]} : vector<4x256xf32> to vector<1x256xf32>
    %278 = vector.broadcast %276 : vector<16x1xf32> to vector<16x256xf32>
    %279 = vector.broadcast %277 : vector<1x256xf32> to vector<16x256xf32>
    %280 = arith.mulf %278, %279 : vector<16x256xf32>
    %281 = arith.addf %274, %280 : vector<16x256xf32>
    %c1_118 = arith.constant 1 : index
    %c0_119 = arith.constant 0 : index
    %c0_120 = arith.constant 0 : index
    %282 = vector.load %arg1[%c1_118, %c0_119, %c0_120] : memref<4x16x1xf32, #tpu.memory_space<vmem>>, vector<1x16x1xf32>
    %283 = vector.shape_cast %282 : vector<1x16x1xf32> to vector<16x1xf32>
    %284 = vector.extract_strided_slice %273 {offsets = [1, 0], sizes = [1, 256], strides = [1, 1]} : vector<4x256xf32> to vector<1x256xf32>
    %285 = vector.broadcast %283 : vector<16x1xf32> to vector<16x256xf32>
    %286 = vector.broadcast %284 : vector<1x256xf32> to vector<16x256xf32>
    %287 = arith.mulf %285, %286 : vector<16x256xf32>
    %288 = arith.addf %281, %287 : vector<16x256xf32>
    %c2_121 = arith.constant 2 : index
    %c0_122 = arith.constant 0 : index
    %c0_123 = arith.constant 0 : index
    %289 = vector.load %arg1[%c2_121, %c0_122, %c0_123] : memref<4x16x1xf32, #tpu.memory_space<vmem>>, vector<1x16x1xf32>
    %290 = vector.shape_cast %289 : vector<1x16x1xf32> to vector<16x1xf32>
    %291 = vector.extract_strided_slice %273 {offsets = [2, 0], sizes = [1, 256], strides = [1, 1]} : vector<4x256xf32> to vector<1x256xf32>
    %292 = vector.broadcast %290 : vector<16x1xf32> to vector<16x256xf32>
    %293 = vector.broadcast %291 : vector<1x256xf32> to vector<16x256xf32>
    %294 = arith.mulf %292, %293 : vector<16x256xf32>
    %295 = arith.addf %288, %294 : vector<16x256xf32>
    %c3_124 = arith.constant 3 : index
    %c0_125 = arith.constant 0 : index
    %c0_126 = arith.constant 0 : index
    %296 = vector.load %arg1[%c3_124, %c0_125, %c0_126] : memref<4x16x1xf32, #tpu.memory_space<vmem>>, vector<1x16x1xf32>
    %297 = vector.shape_cast %296 : vector<1x16x1xf32> to vector<16x1xf32>
    %298 = vector.extract_strided_slice %273 {offsets = [3, 0], sizes = [1, 256], strides = [1, 1]} : vector<4x256xf32> to vector<1x256xf32>
    %299 = vector.broadcast %297 : vector<16x1xf32> to vector<16x256xf32>
    %300 = vector.broadcast %298 : vector<1x256xf32> to vector<16x256xf32>
    %301 = arith.mulf %299, %300 : vector<16x256xf32>
    %302 = arith.addf %295, %301 : vector<16x256xf32>
    %c0_127 = arith.constant 0 : index
    %c0_128 = arith.constant 0 : index
    %303 = vector.load %arg2[%c0_127, %c0_128] : memref<16x1xf32, #tpu.memory_space<vmem>>, vector<16x1xf32>
    %304 = vector.broadcast %303 : vector<16x1xf32> to vector<16x256xf32>
    %305 = arith.addf %302, %304 : vector<16x256xf32>
    %306 = arith.negf %305 : vector<16x256xf32>
    %307 = math.exp %306 : vector<16x256xf32>
    %cst_129 = arith.constant 1.000000e+00 : f32
    %308 = vector.broadcast %cst_129 : f32 to vector<16x256xf32>
    %309 = arith.addf %308, %307 : vector<16x256xf32>
    %310 = arith.divf %308, %309 : vector<16x256xf32>
    %311 = arith.mulf %305, %310 : vector<16x256xf32>
    %c0_130 = arith.constant 0 : index
    %c128_131 = arith.constant 128 : index
    %312 = vector.load %arg8[%c0_130, %c128_131] : memref<16x512xf32, #tpu.memory_space<vmem>>, vector<16x256xf32>
    tpu.vector_store %arg8[%c0_130, %c128_131], %311 {strides = array<i32>} : memref<16x512xf32, #tpu.memory_space<vmem>>, vector<16x256xf32>,
    %cst_132 = arith.constant 0.000000e+00 : f32
    %313 = vector.broadcast %cst_132 : f32 to vector<16x256xf32>
    %c0_133 = arith.constant 0 : index
    %c111_134 = arith.constant 111 : index
    %314 = vector.load %arg8[%c0_133, %c111_134] : memref<16x512xf32, #tpu.memory_space<vmem>>, vector<16x256xf32>
    %cst_135 = arith.constant 0.000000e+00 : f32
    %315 = vector.shape_cast %20 : vector<1x256xi1> to vector<1x256xi1>
    %316 = vector.broadcast %315 : vector<1x256xi1> to vector<16x256xi1>
    %317 = vector.broadcast %cst_135 : f32 to vector<16x256xf32>
    %318 = arith.select %316, %314, %317 : vector<16x256xi1>, vector<16x256xf32>
    %c0_136 = arith.constant 0 : index
    %c0_137 = arith.constant 0 : index
    %c0_138 = arith.constant 0 : index
    %319 = vector.load %arg3[%c0_136, %c0_137, %c0_138] : memref<9x16x1xf32, #tpu.memory_space<vmem>>, vector<1x16x1xf32>
    %320 = vector.shape_cast %319 : vector<1x16x1xf32> to vector<16x1xf32>
    %321 = vector.broadcast %320 : vector<16x1xf32> to vector<16x256xf32>
    %322 = arith.mulf %318, %321 : vector<16x256xf32>
    %323 = arith.addf %313, %322 : vector<16x256xf32>
    %c0_139 = arith.constant 0 : index
    %c112_140 = arith.constant 112 : index
    %324 = vector.load %arg8[%c0_139, %c112_140] : memref<16x512xf32, #tpu.memory_space<vmem>>, vector<16x256xf32>
    %c1_141 = arith.constant 1 : index
    %c0_142 = arith.constant 0 : index
    %c0_143 = arith.constant 0 : index
    %325 = vector.load %arg3[%c1_141, %c0_142, %c0_143] : memref<9x16x1xf32, #tpu.memory_space<vmem>>, vector<1x16x1xf32>
    %326 = vector.shape_cast %325 : vector<1x16x1xf32> to vector<16x1xf32>
    %327 = vector.broadcast %326 : vector<16x1xf32> to vector<16x256xf32>
    %328 = arith.mulf %324, %327 : vector<16x256xf32>
    %329 = arith.addf %323, %328 : vector<16x256xf32>
    %c0_144 = arith.constant 0 : index
    %c113_145 = arith.constant 113 : index
    %330 = vector.load %arg8[%c0_144, %c113_145] : memref<16x512xf32, #tpu.memory_space<vmem>>, vector<16x256xf32>
    %cst_146 = arith.constant 0.000000e+00 : f32
    %331 = vector.shape_cast %22 : vector<1x256xi1> to vector<1x256xi1>
    %332 = vector.broadcast %331 : vector<1x256xi1> to vector<16x256xi1>
    %333 = vector.broadcast %cst_146 : f32 to vector<16x256xf32>
    %334 = arith.select %332, %330, %333 : vector<16x256xi1>, vector<16x256xf32>
    %c2_147 = arith.constant 2 : index
    %c0_148 = arith.constant 0 : index
    %c0_149 = arith.constant 0 : index
    %335 = vector.load %arg3[%c2_147, %c0_148, %c0_149] : memref<9x16x1xf32, #tpu.memory_space<vmem>>, vector<1x16x1xf32>
    %336 = vector.shape_cast %335 : vector<1x16x1xf32> to vector<16x1xf32>
    %337 = vector.broadcast %336 : vector<16x1xf32> to vector<16x256xf32>
    %338 = arith.mulf %334, %337 : vector<16x256xf32>
    %339 = arith.addf %329, %338 : vector<16x256xf32>
    %c0_150 = arith.constant 0 : index
    %c127_151 = arith.constant 127 : index
    %340 = vector.load %arg8[%c0_150, %c127_151] : memref<16x512xf32, #tpu.memory_space<vmem>>, vector<16x256xf32>
    %cst_152 = arith.constant 0.000000e+00 : f32
    %341 = vector.shape_cast %20 : vector<1x256xi1> to vector<1x256xi1>
    %342 = vector.broadcast %341 : vector<1x256xi1> to vector<16x256xi1>
    %343 = vector.broadcast %cst_152 : f32 to vector<16x256xf32>
    %344 = arith.select %342, %340, %343 : vector<16x256xi1>, vector<16x256xf32>
    %c3_153 = arith.constant 3 : index
    %c0_154 = arith.constant 0 : index
    %c0_155 = arith.constant 0 : index
    %345 = vector.load %arg3[%c3_153, %c0_154, %c0_155] : memref<9x16x1xf32, #tpu.memory_space<vmem>>, vector<1x16x1xf32>
    %346 = vector.shape_cast %345 : vector<1x16x1xf32> to vector<16x1xf32>
    %347 = vector.broadcast %346 : vector<16x1xf32> to vector<16x256xf32>
    %348 = arith.mulf %344, %347 : vector<16x256xf32>
    %349 = arith.addf %339, %348 : vector<16x256xf32>
    %c0_156 = arith.constant 0 : index
    %c128_157 = arith.constant 128 : index
    %350 = vector.load %arg8[%c0_156, %c128_157] : memref<16x512xf32, #tpu.memory_space<vmem>>, vector<16x256xf32>
    %c4_158 = arith.constant 4 : index
    %c0_159 = arith.constant 0 : index
    %c0_160 = arith.constant 0 : index
    %351 = vector.load %arg3[%c4_158, %c0_159, %c0_160] : memref<9x16x1xf32, #tpu.memory_space<vmem>>, vector<1x16x1xf32>
    %352 = vector.shape_cast %351 : vector<1x16x1xf32> to vector<16x1xf32>
    %353 = vector.broadcast %352 : vector<16x1xf32> to vector<16x256xf32>
    %354 = arith.mulf %350, %353 : vector<16x256xf32>
    %355 = arith.addf %349, %354 : vector<16x256xf32>
    %c0_161 = arith.constant 0 : index
    %c129_162 = arith.constant 129 : index
    %356 = vector.load %arg8[%c0_161, %c129_162] : memref<16x512xf32, #tpu.memory_space<vmem>>, vector<16x256xf32>
    %cst_163 = arith.constant 0.000000e+00 : f32
    %357 = vector.shape_cast %22 : vector<1x256xi1> to vector<1x256xi1>
    %358 = vector.broadcast %357 : vector<1x256xi1> to vector<16x256xi1>
    %359 = vector.broadcast %cst_163 : f32 to vector<16x256xf32>
    %360 = arith.select %358, %356, %359 : vector<16x256xi1>, vector<16x256xf32>
    %c5_164 = arith.constant 5 : index
    %c0_165 = arith.constant 0 : index
    %c0_166 = arith.constant 0 : index
    %361 = vector.load %arg3[%c5_164, %c0_165, %c0_166] : memref<9x16x1xf32, #tpu.memory_space<vmem>>, vector<1x16x1xf32>
    %362 = vector.shape_cast %361 : vector<1x16x1xf32> to vector<16x1xf32>
    %363 = vector.broadcast %362 : vector<16x1xf32> to vector<16x256xf32>
    %364 = arith.mulf %360, %363 : vector<16x256xf32>
    %365 = arith.addf %355, %364 : vector<16x256xf32>
    %c0_167 = arith.constant 0 : index
    %c143_168 = arith.constant 143 : index
    %366 = vector.load %arg8[%c0_167, %c143_168] : memref<16x512xf32, #tpu.memory_space<vmem>>, vector<16x256xf32>
    %cst_169 = arith.constant 0.000000e+00 : f32
    %367 = vector.shape_cast %20 : vector<1x256xi1> to vector<1x256xi1>
    %368 = vector.broadcast %367 : vector<1x256xi1> to vector<16x256xi1>
    %369 = vector.broadcast %cst_169 : f32 to vector<16x256xf32>
    %370 = arith.select %368, %366, %369 : vector<16x256xi1>, vector<16x256xf32>
    %c6_170 = arith.constant 6 : index
    %c0_171 = arith.constant 0 : index
    %c0_172 = arith.constant 0 : index
    %371 = vector.load %arg3[%c6_170, %c0_171, %c0_172] : memref<9x16x1xf32, #tpu.memory_space<vmem>>, vector<1x16x1xf32>
    %372 = vector.shape_cast %371 : vector<1x16x1xf32> to vector<16x1xf32>
    %373 = vector.broadcast %372 : vector<16x1xf32> to vector<16x256xf32>
    %374 = arith.mulf %370, %373 : vector<16x256xf32>
    %375 = arith.addf %365, %374 : vector<16x256xf32>
    %c0_173 = arith.constant 0 : index
    %c144_174 = arith.constant 144 : index
    %376 = vector.load %arg8[%c0_173, %c144_174] : memref<16x512xf32, #tpu.memory_space<vmem>>, vector<16x256xf32>
    %c7_175 = arith.constant 7 : index
    %c0_176 = arith.constant 0 : index
    %c0_177 = arith.constant 0 : index
    %377 = vector.load %arg3[%c7_175, %c0_176, %c0_177] : memref<9x16x1xf32, #tpu.memory_space<vmem>>, vector<1x16x1xf32>
    %378 = vector.shape_cast %377 : vector<1x16x1xf32> to vector<16x1xf32>
    %379 = vector.broadcast %378 : vector<16x1xf32> to vector<16x256xf32>
    %380 = arith.mulf %376, %379 : vector<16x256xf32>
    %381 = arith.addf %375, %380 : vector<16x256xf32>
    %c0_178 = arith.constant 0 : index
    %c145_179 = arith.constant 145 : index
    %382 = vector.load %arg8[%c0_178, %c145_179] : memref<16x512xf32, #tpu.memory_space<vmem>>, vector<16x256xf32>
    %cst_180 = arith.constant 0.000000e+00 : f32
    %383 = vector.shape_cast %22 : vector<1x256xi1> to vector<1x256xi1>
    %384 = vector.broadcast %383 : vector<1x256xi1> to vector<16x256xi1>
    %385 = vector.broadcast %cst_180 : f32 to vector<16x256xf32>
    %386 = arith.select %384, %382, %385 : vector<16x256xi1>, vector<16x256xf32>
    %c8_181 = arith.constant 8 : index
    %c0_182 = arith.constant 0 : index
    %c0_183 = arith.constant 0 : index
    %387 = vector.load %arg3[%c8_181, %c0_182, %c0_183] : memref<9x16x1xf32, #tpu.memory_space<vmem>>, vector<1x16x1xf32>
    %388 = vector.shape_cast %387 : vector<1x16x1xf32> to vector<16x1xf32>
    %389 = vector.broadcast %388 : vector<16x1xf32> to vector<16x256xf32>
    %390 = arith.mulf %386, %389 : vector<16x256xf32>
    %391 = arith.addf %381, %390 : vector<16x256xf32>
    %c0_184 = arith.constant 0 : index
    %c0_185 = arith.constant 0 : index
    %392 = vector.load %arg4[%c0_184, %c0_185] : memref<16x1xf32, #tpu.memory_space<vmem>>, vector<16x1xf32>
    %393 = vector.broadcast %392 : vector<16x1xf32> to vector<16x256xf32>
    %394 = arith.addf %391, %393 : vector<16x256xf32>
    %395 = arith.negf %394 : vector<16x256xf32>
    %396 = math.exp %395 : vector<16x256xf32>
    %cst_186 = arith.constant 1.000000e+00 : f32
    %397 = vector.broadcast %cst_186 : f32 to vector<16x256xf32>
    %398 = arith.addf %397, %396 : vector<16x256xf32>
    %399 = arith.divf %397, %398 : vector<16x256xf32>
    %400 = arith.mulf %394, %399 : vector<16x256xf32>
    %cst_187 = arith.constant 0.000000e+00 : f32
    %401 = vector.broadcast %cst_187 : f32 to vector<4x256xf32>
    %c0_188 = arith.constant 0 : index
    %c0_189 = arith.constant 0 : index
    %c0_190 = arith.constant 0 : index
    %402 = vector.load %arg5[%c0_188, %c0_189, %c0_190] : memref<16x4x1xf32, #tpu.memory_space<vmem>>, vector<1x4x1xf32>
    %403 = vector.shape_cast %402 : vector<1x4x1xf32> to vector<4x1xf32>
    %404 = vector.extract_strided_slice %400 {offsets = [0, 0], sizes = [1, 256], strides = [1, 1]} : vector<16x256xf32> to vector<1x256xf32>
    %405 = vector.broadcast %403 : vector<4x1xf32> to vector<4x256xf32>
    %406 = vector.broadcast %404 : vector<1x256xf32> to vector<4x256xf32>
    %407 = arith.mulf %405, %406 : vector<4x256xf32>
    %408 = arith.addf %401, %407 : vector<4x256xf32>
    %c1_191 = arith.constant 1 : index
    %c0_192 = arith.constant 0 : index
    %c0_193 = arith.constant 0 : index
    %409 = vector.load %arg5[%c1_191, %c0_192, %c0_193] : memref<16x4x1xf32, #tpu.memory_space<vmem>>, vector<1x4x1xf32>
    %410 = vector.shape_cast %409 : vector<1x4x1xf32> to vector<4x1xf32>
    %411 = vector.extract_strided_slice %400 {offsets = [1, 0], sizes = [1, 256], strides = [1, 1]} : vector<16x256xf32> to vector<1x256xf32>
    %412 = vector.broadcast %410 : vector<4x1xf32> to vector<4x256xf32>
    %413 = vector.broadcast %411 : vector<1x256xf32> to vector<4x256xf32>
    %414 = arith.mulf %412, %413 : vector<4x256xf32>
    %415 = arith.addf %408, %414 : vector<4x256xf32>
    %c2_194 = arith.constant 2 : index
    %c0_195 = arith.constant 0 : index
    %c0_196 = arith.constant 0 : index
    %416 = vector.load %arg5[%c2_194, %c0_195, %c0_196] : memref<16x4x1xf32, #tpu.memory_space<vmem>>, vector<1x4x1xf32>
    %417 = vector.shape_cast %416 : vector<1x4x1xf32> to vector<4x1xf32>
    %418 = vector.extract_strided_slice %400 {offsets = [2, 0], sizes = [1, 256], strides = [1, 1]} : vector<16x256xf32> to vector<1x256xf32>
    %419 = vector.broadcast %417 : vector<4x1xf32> to vector<4x256xf32>
    %420 = vector.broadcast %418 : vector<1x256xf32> to vector<4x256xf32>
    %421 = arith.mulf %419, %420 : vector<4x256xf32>
    %422 = arith.addf %415, %421 : vector<4x256xf32>
    %c3_197 = arith.constant 3 : index
    %c0_198 = arith.constant 0 : index
    %c0_199 = arith.constant 0 : index
    %423 = vector.load %arg5[%c3_197, %c0_198, %c0_199] : memref<16x4x1xf32, #tpu.memory_space<vmem>>, vector<1x4x1xf32>
    %424 = vector.shape_cast %423 : vector<1x4x1xf32> to vector<4x1xf32>
    %425 = vector.extract_strided_slice %400 {offsets = [3, 0], sizes = [1, 256], strides = [1, 1]} : vector<16x256xf32> to vector<1x256xf32>
    %426 = vector.broadcast %424 : vector<4x1xf32> to vector<4x256xf32>
    %427 = vector.broadcast %425 : vector<1x256xf32> to vector<4x256xf32>
    %428 = arith.mulf %426, %427 : vector<4x256xf32>
    %429 = arith.addf %422, %428 : vector<4x256xf32>
    %c4_200 = arith.constant 4 : index
    %c0_201 = arith.constant 0 : index
    %c0_202 = arith.constant 0 : index
    %430 = vector.load %arg5[%c4_200, %c0_201, %c0_202] : memref<16x4x1xf32, #tpu.memory_space<vmem>>, vector<1x4x1xf32>
    %431 = vector.shape_cast %430 : vector<1x4x1xf32> to vector<4x1xf32>
    %432 = vector.extract_strided_slice %400 {offsets = [4, 0], sizes = [1, 256], strides = [1, 1]} : vector<16x256xf32> to vector<1x256xf32>
    %433 = vector.broadcast %431 : vector<4x1xf32> to vector<4x256xf32>
    %434 = vector.broadcast %432 : vector<1x256xf32> to vector<4x256xf32>
    %435 = arith.mulf %433, %434 : vector<4x256xf32>
    %436 = arith.addf %429, %435 : vector<4x256xf32>
    %c5_203 = arith.constant 5 : index
    %c0_204 = arith.constant 0 : index
    %c0_205 = arith.constant 0 : index
    %437 = vector.load %arg5[%c5_203, %c0_204, %c0_205] : memref<16x4x1xf32, #tpu.memory_space<vmem>>, vector<1x4x1xf32>
    %438 = vector.shape_cast %437 : vector<1x4x1xf32> to vector<4x1xf32>
    %439 = vector.extract_strided_slice %400 {offsets = [5, 0], sizes = [1, 256], strides = [1, 1]} : vector<16x256xf32> to vector<1x256xf32>
    %440 = vector.broadcast %438 : vector<4x1xf32> to vector<4x256xf32>
    %441 = vector.broadcast %439 : vector<1x256xf32> to vector<4x256xf32>
    %442 = arith.mulf %440, %441 : vector<4x256xf32>
    %443 = arith.addf %436, %442 : vector<4x256xf32>
    %c6_206 = arith.constant 6 : index
    %c0_207 = arith.constant 0 : index
    %c0_208 = arith.constant 0 : index
    %444 = vector.load %arg5[%c6_206, %c0_207, %c0_208] : memref<16x4x1xf32, #tpu.memory_space<vmem>>, vector<1x4x1xf32>
    %445 = vector.shape_cast %444 : vector<1x4x1xf32> to vector<4x1xf32>
    %446 = vector.extract_strided_slice %400 {offsets = [6, 0], sizes = [1, 256], strides = [1, 1]} : vector<16x256xf32> to vector<1x256xf32>
    %447 = vector.broadcast %445 : vector<4x1xf32> to vector<4x256xf32>
    %448 = vector.broadcast %446 : vector<1x256xf32> to vector<4x256xf32>
    %449 = arith.mulf %447, %448 : vector<4x256xf32>
    %450 = arith.addf %443, %449 : vector<4x256xf32>
    %c7_209 = arith.constant 7 : index
    %c0_210 = arith.constant 0 : index
    %c0_211 = arith.constant 0 : index
    %451 = vector.load %arg5[%c7_209, %c0_210, %c0_211] : memref<16x4x1xf32, #tpu.memory_space<vmem>>, vector<1x4x1xf32>
    %452 = vector.shape_cast %451 : vector<1x4x1xf32> to vector<4x1xf32>
    %453 = vector.extract_strided_slice %400 {offsets = [7, 0], sizes = [1, 256], strides = [1, 1]} : vector<16x256xf32> to vector<1x256xf32>
    %454 = vector.broadcast %452 : vector<4x1xf32> to vector<4x256xf32>
    %455 = vector.broadcast %453 : vector<1x256xf32> to vector<4x256xf32>
    %456 = arith.mulf %454, %455 : vector<4x256xf32>
    %457 = arith.addf %450, %456 : vector<4x256xf32>
    %c8_212 = arith.constant 8 : index
    %c0_213 = arith.constant 0 : index
    %c0_214 = arith.constant 0 : index
    %458 = vector.load %arg5[%c8_212, %c0_213, %c0_214] : memref<16x4x1xf32, #tpu.memory_space<vmem>>, vector<1x4x1xf32>
    %459 = vector.shape_cast %458 : vector<1x4x1xf32> to vector<4x1xf32>
    %460 = vector.extract_strided_slice %400 {offsets = [8, 0], sizes = [1, 256], strides = [1, 1]} : vector<16x256xf32> to vector<1x256xf32>
    %461 = vector.broadcast %459 : vector<4x1xf32> to vector<4x256xf32>
    %462 = vector.broadcast %460 : vector<1x256xf32> to vector<4x256xf32>
    %463 = arith.mulf %461, %462 : vector<4x256xf32>
    %464 = arith.addf %457, %463 : vector<4x256xf32>
    %c9_215 = arith.constant 9 : index
    %c0_216 = arith.constant 0 : index
    %c0_217 = arith.constant 0 : index
    %465 = vector.load %arg5[%c9_215, %c0_216, %c0_217] : memref<16x4x1xf32, #tpu.memory_space<vmem>>, vector<1x4x1xf32>
    %466 = vector.shape_cast %465 : vector<1x4x1xf32> to vector<4x1xf32>
    %467 = vector.extract_strided_slice %400 {offsets = [9, 0], sizes = [1, 256], strides = [1, 1]} : vector<16x256xf32> to vector<1x256xf32>
    %468 = vector.broadcast %466 : vector<4x1xf32> to vector<4x256xf32>
    %469 = vector.broadcast %467 : vector<1x256xf32> to vector<4x256xf32>
    %470 = arith.mulf %468, %469 : vector<4x256xf32>
    %471 = arith.addf %464, %470 : vector<4x256xf32>
    %c10_218 = arith.constant 10 : index
    %c0_219 = arith.constant 0 : index
    %c0_220 = arith.constant 0 : index
    %472 = vector.load %arg5[%c10_218, %c0_219, %c0_220] : memref<16x4x1xf32, #tpu.memory_space<vmem>>, vector<1x4x1xf32>
    %473 = vector.shape_cast %472 : vector<1x4x1xf32> to vector<4x1xf32>
    %474 = vector.extract_strided_slice %400 {offsets = [10, 0], sizes = [1, 256], strides = [1, 1]} : vector<16x256xf32> to vector<1x256xf32>
    %475 = vector.broadcast %473 : vector<4x1xf32> to vector<4x256xf32>
    %476 = vector.broadcast %474 : vector<1x256xf32> to vector<4x256xf32>
    %477 = arith.mulf %475, %476 : vector<4x256xf32>
    %478 = arith.addf %471, %477 : vector<4x256xf32>
    %c11_221 = arith.constant 11 : index
    %c0_222 = arith.constant 0 : index
    %c0_223 = arith.constant 0 : index
    %479 = vector.load %arg5[%c11_221, %c0_222, %c0_223] : memref<16x4x1xf32, #tpu.memory_space<vmem>>, vector<1x4x1xf32>
    %480 = vector.shape_cast %479 : vector<1x4x1xf32> to vector<4x1xf32>
    %481 = vector.extract_strided_slice %400 {offsets = [11, 0], sizes = [1, 256], strides = [1, 1]} : vector<16x256xf32> to vector<1x256xf32>
    %482 = vector.broadcast %480 : vector<4x1xf32> to vector<4x256xf32>
    %483 = vector.broadcast %481 : vector<1x256xf32> to vector<4x256xf32>
    %484 = arith.mulf %482, %483 : vector<4x256xf32>
    %485 = arith.addf %478, %484 : vector<4x256xf32>
    %c12_224 = arith.constant 12 : index
    %c0_225 = arith.constant 0 : index
    %c0_226 = arith.constant 0 : index
    %486 = vector.load %arg5[%c12_224, %c0_225, %c0_226] : memref<16x4x1xf32, #tpu.memory_space<vmem>>, vector<1x4x1xf32>
    %487 = vector.shape_cast %486 : vector<1x4x1xf32> to vector<4x1xf32>
    %488 = vector.extract_strided_slice %400 {offsets = [12, 0], sizes = [1, 256], strides = [1, 1]} : vector<16x256xf32> to vector<1x256xf32>
    %489 = vector.broadcast %487 : vector<4x1xf32> to vector<4x256xf32>
    %490 = vector.broadcast %488 : vector<1x256xf32> to vector<4x256xf32>
    %491 = arith.mulf %489, %490 : vector<4x256xf32>
    %492 = arith.addf %485, %491 : vector<4x256xf32>
    %c13_227 = arith.constant 13 : index
    %c0_228 = arith.constant 0 : index
    %c0_229 = arith.constant 0 : index
    %493 = vector.load %arg5[%c13_227, %c0_228, %c0_229] : memref<16x4x1xf32, #tpu.memory_space<vmem>>, vector<1x4x1xf32>
    %494 = vector.shape_cast %493 : vector<1x4x1xf32> to vector<4x1xf32>
    %495 = vector.extract_strided_slice %400 {offsets = [13, 0], sizes = [1, 256], strides = [1, 1]} : vector<16x256xf32> to vector<1x256xf32>
    %496 = vector.broadcast %494 : vector<4x1xf32> to vector<4x256xf32>
    %497 = vector.broadcast %495 : vector<1x256xf32> to vector<4x256xf32>
    %498 = arith.mulf %496, %497 : vector<4x256xf32>
    %499 = arith.addf %492, %498 : vector<4x256xf32>
    %c14_230 = arith.constant 14 : index
    %c0_231 = arith.constant 0 : index
    %c0_232 = arith.constant 0 : index
    %500 = vector.load %arg5[%c14_230, %c0_231, %c0_232] : memref<16x4x1xf32, #tpu.memory_space<vmem>>, vector<1x4x1xf32>
    %501 = vector.shape_cast %500 : vector<1x4x1xf32> to vector<4x1xf32>
    %502 = vector.extract_strided_slice %400 {offsets = [14, 0], sizes = [1, 256], strides = [1, 1]} : vector<16x256xf32> to vector<1x256xf32>
    %503 = vector.broadcast %501 : vector<4x1xf32> to vector<4x256xf32>
    %504 = vector.broadcast %502 : vector<1x256xf32> to vector<4x256xf32>
    %505 = arith.mulf %503, %504 : vector<4x256xf32>
    %506 = arith.addf %499, %505 : vector<4x256xf32>
    %c15_233 = arith.constant 15 : index
    %c0_234 = arith.constant 0 : index
    %c0_235 = arith.constant 0 : index
    %507 = vector.load %arg5[%c15_233, %c0_234, %c0_235] : memref<16x4x1xf32, #tpu.memory_space<vmem>>, vector<1x4x1xf32>
    %508 = vector.shape_cast %507 : vector<1x4x1xf32> to vector<4x1xf32>
    %509 = vector.extract_strided_slice %400 {offsets = [15, 0], sizes = [1, 256], strides = [1, 1]} : vector<16x256xf32> to vector<1x256xf32>
    %510 = vector.broadcast %508 : vector<4x1xf32> to vector<4x256xf32>
    %511 = vector.broadcast %509 : vector<1x256xf32> to vector<4x256xf32>
    %512 = arith.mulf %510, %511 : vector<4x256xf32>
    %513 = arith.addf %506, %512 : vector<4x256xf32>
    %c0_236 = arith.constant 0 : index
    %c0_237 = arith.constant 0 : index
    %514 = vector.load %arg6[%c0_236, %c0_237] : memref<4x1xf32, #tpu.memory_space<vmem>>, vector<4x1xf32>
    %515 = vector.broadcast %514 : vector<4x1xf32> to vector<4x256xf32>
    %516 = arith.addf %513, %515 : vector<4x256xf32>
    %517 = arith.addf %516, %273 : vector<4x256xf32>
    %c1_238 = arith.constant 1 : index
    %c0_239 = arith.constant 0 : index
    %c0_240 = arith.constant 0 : index
    %518 = vector.load %arg7[%c1_238, %c0_239, %c0_240] : memref<2x4x256xf32, #tpu.memory_space<vmem>>, vector<1x4x256xf32>
    %519 = vector.shape_cast %518 : vector<1x4x256xf32> to vector<4x256xf32>
    %520 = vector.shape_cast %517 : vector<4x256xf32> to vector<1x4x256xf32>
    tpu.vector_store %arg7[%c1_238, %c0_239, %c0_240], %520 {strides = array<i32>} : memref<2x4x256xf32, #tpu.memory_space<vmem>>, vector<1x4x256xf32>,
    return
  }
}

</mosaic_0001>

<llo_original>
// kernel: mbconv_forward.1
$region0: #{mbconv_forward.1}
  #allocation0 [shape = 'u32[]', space=smem, size = 0x4, offset = 0x4, fixed_abs, tag = 'smem constant byte address 0x4 - core index']
  #allocation1 [shape = 'u32[72,128]{1,0:T(1,128)}', space=vmem, size = 0x9000, scoped, tag = 'internal scratch']
  #allocation2 [shape = 'f32[16,512]{1,0:T(8,128)}', space=vmem, size = 0x8000, scoped, tag = 'scratch operand']
  %s0 = inlined_call_operand.vmem [shape: f32[2,4,256], index: 0, kind: input, shape index: {}]
  %s1 = inlined_call_operand.vmem [shape: f32[4,16,1], index: 1, kind: input, shape index: {}]
  %s2 = inlined_call_operand.vmem [shape: f32[16,1], index: 2, kind: input, shape index: {}]
  %s3 = inlined_call_operand.vmem [shape: f32[9,16,1], index: 3, kind: input, shape index: {}]
  %s4 = inlined_call_operand.vmem [shape: f32[16,1], index: 4, kind: input, shape index: {}]
  %s5 = inlined_call_operand.vmem [shape: f32[16,4,1], index: 5, kind: input, shape index: {}]
  %s6 = inlined_call_operand.vmem [shape: f32[4,1], index: 6, kind: input, shape index: {}]
  %s7 = inlined_call_operand.vmem [shape: f32[2,4,256], index: 7, kind: output, shape index: {}]
  %s8 = sld [smem:[#allocation0]]
  $region38: #{mbconv_forward.1} parent=0
    _
  %s10 = ssub.s32 1, %s8
  %s11 = scalar_select 0, %s10, %s8
  // Predicated region
  $region2: #{mbconv_forward.1} parent=0 // pred_check
    _
  $region3: #{mbconv_forward.1} parent=0 // pred_check_branch
    %13 = sbr.rel (0) target = $region5
  $region4: #{mbconv_forward.1} parent=0 // pred_region
    _
  $region5: #{mbconv_forward.1} parent=0 // pred_fallthru
    _
  // Predicated region
  $region6: #{mbconv_forward.1} parent=0 // pred_check
    _
  $region7: #{mbconv_forward.1} parent=0 // pred_check_branch
    %15 = sbr.rel (0) target = $region9
  $region8: #{mbconv_forward.1} parent=0 // pred_region
    _
  $region9: #{mbconv_forward.1} parent=0 // pred_fallthru
    _
  // Predicated region
  $region10: #{mbconv_forward.1} parent=0 // pred_check
    _
  $region11: #{mbconv_forward.1} parent=0 // pred_check_branch
    %17 = sbr.rel (0) target = $region13
  $region12: #{mbconv_forward.1} parent=0 // pred_region
    _
  $region13: #{mbconv_forward.1} parent=0 // pred_fallthru
    _
  // Predicated region
  $region14: #{mbconv_forward.1} parent=0 // pred_check
    _
  $region15: #{mbconv_forward.1} parent=0 // pred_check_branch
    %19 = sbr.rel (0) target = $region17
  $region16: #{mbconv_forward.1} parent=0 // pred_region
    _
  $region17: #{mbconv_forward.1} parent=0 // pred_fallthru
    _
  // Predicated region
  $region18: #{mbconv_forward.1} parent=0 // pred_check
    _
  $region19: #{mbconv_forward.1} parent=0 // pred_check_branch
    %21 = sbr.rel (0) target = $region21
  $region20: #{mbconv_forward.1} parent=0 // pred_region
    _
  $region21: #{mbconv_forward.1} parent=0 // pred_fallthru
    _
  // Predicated region
  $region22: #{mbconv_forward.1} parent=0 // pred_check
    _
  $region23: #{mbconv_forward.1} parent=0 // pred_check_branch
    %23 = sbr.rel (0) target = $region25
  $region24: #{mbconv_forward.1} parent=0 // pred_region
    _
  $region25: #{mbconv_forward.1} parent=0 // pred_fallthru
    _
  // Predicated region
  $region26: #{mbconv_forward.1} parent=0 // pred_check
    _
  $region27: #{mbconv_forward.1} parent=0 // pred_check_branch
    %25 = sbr.rel (0) target = $region29
  $region28: #{mbconv_forward.1} parent=0 // pred_region
    _
  $region29: #{mbconv_forward.1} parent=0 // pred_fallthru
    _
  %26 = vst [vmem:[#allocation2] sm:$0xff] 0.0
  %27 = vst [vmem:[#allocation2 + $0x8] sm:$0xff] 0.0
  %28 = vst [vmem:[#allocation2 + $0x10] sm:$0xff] 0.0
  %29 = vst [vmem:[#allocation2 + $0x18] sm:$0xff] 0.0
  %30 = vst [vmem:[#allocation2 + $0x20] sm:$0xff] 0.0
  %31 = vst [vmem:[#allocation2 + $0x28] sm:$0xff] 0.0
  %32 = vst [vmem:[#allocation2 + $0x30] sm:$0xff] 0.0
  %33 = vst [vmem:[#allocation2 + $0x38] sm:$0xff] 0.0
  %v34 = vlaneseq
  %v35 = vand.u32 %v34, 127
  %v36 = vadd.s32 %v35, 128
  %vm37 = vcmp.lt.s32.totalorder %v35, 0
  %v38 = vsub.s32 0, %v35
  %v39 = vsel %vm37, %v38, %v35
  %v40 = vshrl.u32 %v39, 4
  %v41 = vand.u32 %v39, 15
  %v42 = vsub.s32 0, %v41
  %v43 = vsel %vm37, %v42, %v41
  %vm44 = vcmp.lt.s32.totalorder %v36, 0
  %v45 = vsub.s32 0, %v36
  %v46 = vsel %vm44, %v45, %v36
  %v47 = vshrl.u32 %v46, 4
  %v48 = vand.u32 %v46, 15
  %v49 = vsub.s32 0, %v48
  %v50 = vsel %vm44, %v49, %v48
  %vm51 = vcmp.ne.s32.totalorder %v43, 0
  %vm52 = vcmp.ne.s32.totalorder %v50, 0
  %vm53 = vcmp.lt.s32.totalorder %v43, 0
  %vm54 = vcmp.lt.s32.totalorder %v50, 0
  %vm55 = vmand %vm53, %vm51
  %vm56 = vmand %vm54, %vm52
  %v57 = vadd.s32 %v43, 16
  %v58 = vadd.s32 %v50, 16
  %v59 = vsel %vm55, %v57, %v43
  %v60 = vsel %vm56, %v58, %v50
  %vm61 = vcmp.gt.s32.totalorder %v59, 0
  %vm62 = vcmp.gt.s32.totalorder %v60, 0
  %vm63 = vcmp.lt.s32.totalorder %v59, 15
  %vm64 = vcmp.lt.s32.totalorder %v60, 15
  %v65 = vld [vmem:[%s0] sm:$0xff]
  %v66 = vld [vmem:[%s1] sm:$0xff]
  %v67 = vld [vmem:[%s1 + $0x8] sm:$0xff]
  %69 = vset.pattern.permute.xlu0 0
  %70 = vperm.xlu0 %69, %v66
  %v71 = vpop.permute.xlu0 %70
  %74 = vset.pattern.permute.xlu0 0
  %75 = vperm.xlu0 %74, %v67
  %v76 = vpop.permute.xlu0 %75
  %v79 = vperm.slane %v65, 0
  %v80 = vperm.slane %v65, 4
  %v83 = vperm.slane %v79, 0
  %v84 = vperm.slane %v80, 0
  %v85 = vmul.f32 %v71, %v83
  %v86 = vmul.f32 %v71, %v84
  %v87 = vmul.f32 %v76, %v83
  %v88 = vmul.f32 %v76, %v84
  %v89 = vadd.f32 %v85, 0.0
  %v90 = vadd.f32 %v86, 0.0
  %v91 = vadd.f32 %v87, 0.0
  %v92 = vadd.f32 %v88, 0.0
  %s93 = scalar_lea.vmem %s1, 16
  %v94 = vld [vmem:[%s93] sm:$0xff]
  %v95 = vld [vmem:[%s93 + $0x8] sm:$0xff]
  %97 = vset.pattern.permute.xlu0 0
  %98 = vperm.xlu0 %97, %v94
  %v99 = vpop.permute.xlu0 %98
  %102 = vset.pattern.permute.xlu0 0
  %103 = vperm.xlu0 %102, %v95
  %v104 = vpop.permute.xlu0 %103
  %v106 = vperm.slane %v65, 1
  %v107 = vperm.slane %v65, 5
  %v110 = vperm.slane %v106, 1
  %v111 = vperm.slane %v107, 1
  %v112 = vmul.f32 %v99, %v110
  %v113 = vmul.f32 %v99, %v111
  %v114 = vmul.f32 %v104, %v110
  %v115 = vmul.f32 %v104, %v111
  %v116 = vadd.f32 %v89, %v112
  %v117 = vadd.f32 %v90, %v113
  %v118 = vadd.f32 %v91, %v114
  %v119 = vadd.f32 %v92, %v115
  %s120 = scalar_lea.vmem %s1, 32
  %v121 = vld [vmem:[%s120] sm:$0xff]
  %v122 = vld [vmem:[%s120 + $0x8] sm:$0xff]
  %124 = vset.pattern.permute.xlu0 0
  %125 = vperm.xlu0 %124, %v121
  %v126 = vpop.permute.xlu0 %125
  %129 = vset.pattern.permute.xlu0 0
  %130 = vperm.xlu0 %129, %v122
  %v131 = vpop.permute.xlu0 %130
  %v133 = vperm.slane %v65, 2
  %v134 = vperm.slane %v65, 6
  %v137 = vperm.slane %v133, 2
  %v138 = vperm.slane %v134, 2
  %v139 = vmul.f32 %v126, %v137
  %v140 = vmul.f32 %v126, %v138
  %v141 = vmul.f32 %v131, %v137
  %v142 = vmul.f32 %v131, %v138
  %v143 = vadd.f32 %v116, %v139
  %v144 = vadd.f32 %v117, %v140
  %v145 = vadd.f32 %v118, %v141
  %v146 = vadd.f32 %v119, %v142
  %s147 = scalar_lea.vmem %s1, 48
  %v148 = vld [vmem:[%s147] sm:$0xff]
  %v149 = vld [vmem:[%s147 + $0x8] sm:$0xff]
  %151 = vset.pattern.permute.xlu0 0
  %152 = vperm.xlu0 %151, %v148
  %v153 = vpop.permute.xlu0 %152
  %156 = vset.pattern.permute.xlu0 0
  %157 = vperm.xlu0 %156, %v149
  %v158 = vpop.permute.xlu0 %157
  %v160 = vperm.slane %v65, 3
  %v161 = vperm.slane %v65, 7
  %v164 = vperm.slane %v160, 3
  %v165 = vperm.slane %v161, 3
  %v166 = vmul.f32 %v153, %v164
  %v167 = vmul.f32 %v153, %v165
  %v168 = vmul.f32 %v158, %v164
  %v169 = vmul.f32 %v158, %v165
  %v170 = vadd.f32 %v143, %v166
  %v171 = vadd.f32 %v144, %v167
  %v172 = vadd.f32 %v145, %v168
  %v173 = vadd.f32 %v146, %v169
  %v174 = vld [vmem:[%s2] sm:$0xff]
  %v175 = vld [vmem:[%s2 + $0x8] sm:$0xff]
  %177 = vset.pattern.permute.xlu0 0
  %178 = vperm.xlu0 %177, %v174
  %v179 = vpop.permute.xlu0 %178
  %182 = vset.pattern.permute.xlu0 0
  %183 = vperm.xlu0 %182, %v175
  %v184 = vpop.permute.xlu0 %183
  %v186 = vadd.f32 %v170, %v179
  %v187 = vadd.f32 %v171, %v179
  %v188 = vadd.f32 %v172, %v184
  %v189 = vadd.f32 %v173, %v184
  %v190 = vxor.u32 %v186, 2147483648
  %v191 = vxor.u32 %v187, 2147483648
  %v192 = vxor.u32 %v188, 2147483648
  %v193 = vxor.u32 %v189, 2147483648
  %v194 = vmul.f32 %v190, 1.442695
  %v195 = vpow.pop %v194
  %v196 = vmul.f32 %v191, 1.442695
  %v197 = vpow.pop %v196
  %v198 = vmul.f32 %v192, 1.442695
  %v199 = vpow.pop %v198
  %v200 = vmul.f32 %v193, 1.442695
  %v201 = vpow.pop %v200
  %v202 = vadd.f32 %v195, 1.0
  %v203 = vadd.f32 %v197, 1.0
  %v204 = vadd.f32 %v199, 1.0
  %v205 = vadd.f32 %v201, 1.0
  %v206 = vrcp.pop %v202
  %v207 = vmul.f32 %v202, %v206
  %v208 = vsub.f32 1.0, %v207
  %v209 = vmul.f32 %v206, %v208
  %v210 = vadd.f32 %v206, %v209
  %vm211 = vweird.f32 %v202
  %vm212 = vweird.f32 %v206
  %vm213 = vmor %vm211, %vm212
  %v214 = vsel %vm213, %v206, %v210
  %v215 = vand.u32 2147483647, %v202
  %vm216 = vcmp.eq.f32.partialorder %v215, 8.507059e+37
  %v217 = vand.u32 %v202, 2147483648
  %v218 = vor.u32 1.1754944e-38, %v217
  %v219 = vsel %vm216, %v218, %v214
  %v220 = vmul.f32 1.0, %v219
  %v221 = vrcp.pop %v203
  %v222 = vmul.f32 %v203, %v221
  %v223 = vsub.f32 1.0, %v222
  %v224 = vmul.f32 %v221, %v223
  %v225 = vadd.f32 %v221, %v224
  %vm226 = vweird.f32 %v203
  %vm227 = vweird.f32 %v221
  %vm228 = vmor %vm226, %vm227
  %v229 = vsel %vm228, %v221, %v225
  %v230 = vand.u32 2147483647, %v203
  %vm231 = vcmp.eq.f32.partialorder %v230, 8.507059e+37
  %v232 = vand.u32 %v203, 2147483648
  %v233 = vor.u32 1.1754944e-38, %v232
  %v234 = vsel %vm231, %v233, %v229
  %v235 = vmul.f32 1.0, %v234
  %v236 = vrcp.pop %v204
  %v237 = vmul.f32 %v204, %v236
  %v238 = vsub.f32 1.0, %v237
  %v239 = vmul.f32 %v236, %v238
  %v240 = vadd.f32 %v236, %v239
  %vm241 = vweird.f32 %v204
  %vm242 = vweird.f32 %v236
  %vm243 = vmor %vm241, %vm242
  %v244 = vsel %vm243, %v236, %v240
  %v245 = vand.u32 2147483647, %v204
  %vm246 = vcmp.eq.f32.partialorder %v245, 8.507059e+37
  %v247 = vand.u32 %v204, 2147483648
  %v248 = vor.u32 1.1754944e-38, %v247
  %v249 = vsel %vm246, %v248, %v244
  %v250 = vmul.f32 1.0, %v249
  %v251 = vrcp.pop %v205
  %v252 = vmul.f32 %v205, %v251
  %v253 = vsub.f32 1.0, %v252
  %v254 = vmul.f32 %v251, %v253
  %v255 = vadd.f32 %v251, %v254
  %vm256 = vweird.f32 %v205
  %vm257 = vweird.f32 %v251
  %vm258 = vmor %vm256, %vm257
  %v259 = vsel %vm258, %v251, %v255
  %v260 = vand.u32 2147483647, %v205
  %vm261 = vcmp.eq.f32.partialorder %v260, 8.507059e+37
  %v262 = vand.u32 %v205, 2147483648
  %v263 = vor.u32 1.1754944e-38, %v262
  %v264 = vsel %vm261, %v263, %v259
  %v265 = vmul.f32 1.0, %v264
  %v266 = vmul.f32 %v186, %v220
  %v267 = vmul.f32 %v187, %v235
  %v268 = vmul.f32 %v188, %v250
  %v269 = vmul.f32 %v189, %v265
  %270 = vst [vmem:[#allocation2 + $0x8] sm:$0xff] %v266
  %271 = vst [vmem:[#allocation2 + $0x10] sm:$0xff] %v267
  %272 = vst [vmem:[#allocation2 + $0x28] sm:$0xff] %v268
  %273 = vst [vmem:[#allocation2 + $0x30] sm:$0xff] %v269
  %v274 = vld [vmem:[#allocation2] sm:$0xff]
  %v275 = vld [vmem:[#allocation2 + $0x8] sm:$0xff]
  %v276 = vld [vmem:[#allocation2 + $0x10] sm:$0xff]
  %v277 = vld [vmem:[#allocation2 + $0x20] sm:$0xff]
  %v278 = vld [vmem:[#allocation2 + $0x28] sm:$0xff]
  %v279 = vld [vmem:[#allocation2 + $0x30] sm:$0xff]
  %v280 = vsel %vm61, 1, 0
  %v281 = vsel %vm62, 1, 0
  %vm282 = vcmp.eq.s32.totalorder %v280, 1
  %vm283 = vcmp.eq.s32.totalorder %v281, 1
  %290 = vrot.lane.b32.xlu0 %v274, 17
  %v291 = vpop.permute.xlu0 %290
  %292 = vrot.lane.b32.xlu0 %v275, 17
  %v293 = vpop.permute.xlu0 %292
  %294 = vrot.lane.b32.xlu0 %v276, 17
  %v295 = vpop.permute.xlu0 %294
  %296 = vrot.lane.b32.xlu0 %v277, 17
  %v297 = vpop.permute.xlu0 %296
  %298 = vrot.lane.b32.xlu0 %v278, 17
  %v299 = vpop.permute.xlu0 %298
  %300 = vrot.lane.b32.xlu0 %v279, 17
  %v301 = vpop.permute.xlu0 %300
  %vm302 = vcmask 138240
  %v303 = vsel %vm302, %v291, %v293
  %v304 = vsel %vm302, %v293, %v295
  %v305 = vsel %vm302, %v297, %v299
  %v306 = vsel %vm302, %v299, %v301
  %v311 = vsel %vm282, %v303, 0.0
  %v312 = vsel %vm283, %v304, 0.0
  %v313 = vsel %vm282, %v305, 0.0
  %v314 = vsel %vm283, %v306, 0.0
  %v315 = vld [vmem:[%s3] sm:$0xff]
  %v316 = vld [vmem:[%s3 + $0x8] sm:$0xff]
  %318 = vset.pattern.permute.xlu0 0
  %319 = vperm.xlu0 %318, %v315
  %v320 = vpop.permute.xlu0 %319
  %323 = vset.pattern.permute.xlu0 0
  %324 = vperm.xlu0 %323, %v316
  %v325 = vpop.permute.xlu0 %324
  %v327 = vmul.f32 %v311, %v320
  %v328 = vmul.f32 %v312, %v320
  %v329 = vmul.f32 %v313, %v325
  %v330 = vmul.f32 %v314, %v325
  %v331 = vadd.f32 %v327, 0.0
  %v332 = vadd.f32 %v328, 0.0
  %v333 = vadd.f32 %v329, 0.0
  %v334 = vadd.f32 %v330, 0.0
  %s335 = scalar_lea.vmem %s3, 16
  %v336 = vld [vmem:[%s335] sm:$0xff]
  %v337 = vld [vmem:[%s335 + $0x8] sm:$0xff]
  %339 = vset.pattern.permute.xlu0 0
  %340 = vperm.xlu0 %339, %v336
  %v341 = vpop.permute.xlu0 %340
  %344 = vset.pattern.permute.xlu0 0
  %345 = vperm.xlu0 %344, %v337
  %v346 = vpop.permute.xlu0 %345
  %v348 = vmul.f32 %v274, %v341
  %v349 = vmul.f32 %v275, %v341
  %v350 = vmul.f32 %v276, %v341
  %v351 = vmul.f32 %v277, %v346
  %v352 = vmul.f32 %v278, %v346
  %v353 = vmul.f32 %v279, %v346
  %360 = vrot.lane.b32.xlu0 %v348, 16
  %v361 = vpop.permute.xlu0 %360
  %362 = vrot.lane.b32.xlu0 %v349, 16
  %v363 = vpop.permute.xlu0 %362
  %364 = vrot.lane.b32.xlu0 %v350, 16
  %v365 = vpop.permute.xlu0 %364
  %366 = vrot.lane.b32.xlu0 %v351, 16
  %v367 = vpop.permute.xlu0 %366
  %368 = vrot.lane.b32.xlu0 %v352, 16
  %v369 = vpop.permute.xlu0 %368
  %370 = vrot.lane.b32.xlu0 %v353, 16
  %v371 = vpop.permute.xlu0 %370
  %vm372 = vcmask 130048
  %v373 = vsel %vm372, %v361, %v363
  %v374 = vsel %vm372, %v363, %v365
  %v375 = vsel %vm372, %v367, %v369
  %v376 = vsel %vm372, %v369, %v371
  %v381 = vadd.f32 %v331, %v373
  %v382 = vadd.f32 %v332, %v374
  %v383 = vadd.f32 %v333, %v375
  %v384 = vadd.f32 %v334, %v376
  %v385 = vsel %vm63, 1, 0
  %v386 = vsel %vm64, 1, 0
  %vm387 = vcmp.eq.s32.totalorder %v385, 1
  %vm388 = vcmp.eq.s32.totalorder %v386, 1
  %389 = vrot.lane.b32.xlu0 %v274, 15
  %v390 = vpop.permute.xlu0 %389
  %391 = vrot.lane.b32.xlu0 %v275, 15
  %v392 = vpop.permute.xlu0 %391
  %393 = vrot.lane.b32.xlu0 %v276, 15
  %v394 = vpop.permute.xlu0 %393
  %395 = vrot.lane.b32.xlu0 %v277, 15
  %v396 = vpop.permute.xlu0 %395
  %397 = vrot.lane.b32.xlu0 %v278, 15
  %v398 = vpop.permute.xlu0 %397
  %399 = vrot.lane.b32.xlu0 %v279, 15
  %v400 = vpop.permute.xlu0 %399
  %vm401 = vcmask 121856
  %v402 = vsel %vm401, %v390, %v392
  %v403 = vsel %vm401, %v392, %v394
  %v404 = vsel %vm401, %v396, %v398
  %v405 = vsel %vm401, %v398, %v400
  %v410 = vsel %vm387, %v402, 0.0
  %v411 = vsel %vm388, %v403, 0.0
  %v412 = vsel %vm387, %v404, 0.0
  %v413 = vsel %vm388, %v405, 0.0
  %s414 = scalar_lea.vmem %s3, 32
  %v415 = vld [vmem:[%s414] sm:$0xff]
  %v416 = vld [vmem:[%s414 + $0x8] sm:$0xff]
  %418 = vset.pattern.permute.xlu0 0
  %419 = vperm.xlu0 %418, %v415
  %v420 = vpop.permute.xlu0 %419
  %423 = vset.pattern.permute.xlu0 0
  %424 = vperm.xlu0 %423, %v416
  %v425 = vpop.permute.xlu0 %424
  %v427 = vmul.f32 %v410, %v420
  %v428 = vmul.f32 %v411, %v420
  %v429 = vmul.f32 %v412, %v425
  %v430 = vmul.f32 %v413, %v425
  %v431 = vadd.f32 %v381, %v427
  %v432 = vadd.f32 %v382, %v428
  %v433 = vadd.f32 %v383, %v429
  %v434 = vadd.f32 %v384, %v430
  %435 = vrot.lane.b32.xlu0 %v274, 1
  %v436 = vpop.permute.xlu0 %435
  %437 = vrot.lane.b32.xlu0 %v275, 1
  %v438 = vpop.permute.xlu0 %437
  %439 = vrot.lane.b32.xlu0 %v276, 1
  %v440 = vpop.permute.xlu0 %439
  %441 = vrot.lane.b32.xlu0 %v277, 1
  %v442 = vpop.permute.xlu0 %441
  %443 = vrot.lane.b32.xlu0 %v278, 1
  %v444 = vpop.permute.xlu0 %443
  %445 = vrot.lane.b32.xlu0 %v279, 1
  %v446 = vpop.permute.xlu0 %445
  %vm447 = vcmask 7168
  %v448 = vsel %vm447, %v436, %v438
  %v449 = vsel %vm447, %v438, %v440
  %v450 = vsel %vm447, %v442, %v444
  %v451 = vsel %vm447, %v444, %v446
  %v456 = vsel %vm282, %v448, 0.0
  %v457 = vsel %vm283, %v449, 0.0
  %v458 = vsel %vm282, %v450, 0.0
  %v459 = vsel %vm283, %v451, 0.0
  %s460 = scalar_lea.vmem %s3, 48
  %v461 = vld [vmem:[%s460] sm:$0xff]
  %v462 = vld [vmem:[%s460 + $0x8] sm:$0xff]
  %464 = vset.pattern.permute.xlu0 0
  %465 = vperm.xlu0 %464, %v461
  %v466 = vpop.permute.xlu0 %465
  %469 = vset.pattern.permute.xlu0 0
  %470 = vperm.xlu0 %469, %v462
  %v471 = vpop.permute.xlu0 %470
  %v473 = vmul.f32 %v456, %v466
  %v474 = vmul.f32 %v457, %v466
  %v475 = vmul.f32 %v458, %v471
  %v476 = vmul.f32 %v459, %v471
  %v477 = vadd.f32 %v431, %v473
  %v478 = vadd.f32 %v432, %v474
  %v479 = vadd.f32 %v433, %v475
  %v480 = vadd.f32 %v434, %v476
  %s481 = scalar_lea.vmem %s3, 64
  %v482 = vld [vmem:[%s481] sm:$0xff]
  %v483 = vld [vmem:[%s481 + $0x8] sm:$0xff]
  %485 = vset.pattern.permute.xlu0 0
  %486 = vperm.xlu0 %485, %v482
  %v487 = vpop.permute.xlu0 %486
  %490 = vset.pattern.permute.xlu0 0
  %491 = vperm.xlu0 %490, %v483
  %v492 = vpop.permute.xlu0 %491
  %v494 = vmul.f32 %v275, %v487
  %v495 = vmul.f32 %v276, %v487
  %v496 = vmul.f32 %v278, %v492
  %v497 = vmul.f32 %v279, %v492
  %v498 = vadd.f32 %v477, %v494
  %v499 = vadd.f32 %v478, %v495
  %v500 = vadd.f32 %v479, %v496
  %v501 = vadd.f32 %v480, %v497
  %v502 = vld [vmem:[#allocation2 + $0x8] sm:$0xff]
  %v503 = vld [vmem:[#allocation2 + $0x10] sm:$0xff]
  %v504 = vld [vmem:[#allocation2 + $0x18] sm:$0xff]
  %v505 = vld [vmem:[#allocation2 + $0x28] sm:$0xff]
  %v506 = vld [vmem:[#allocation2 + $0x30] sm:$0xff]
  %v507 = vld [vmem:[#allocation2 + $0x38] sm:$0xff]
  %514 = vrot.lane.b32.xlu0 %v502, 127
  %v515 = vpop.permute.xlu0 %514
  %516 = vrot.lane.b32.xlu0 %v503, 127
  %v517 = vpop.permute.xlu0 %516
  %518 = vrot.lane.b32.xlu0 %v504, 127
  %v519 = vpop.permute.xlu0 %518
  %520 = vrot.lane.b32.xlu0 %v505, 127
  %v521 = vpop.permute.xlu0 %520
  %522 = vrot.lane.b32.xlu0 %v506, 127
  %v523 = vpop.permute.xlu0 %522
  %524 = vrot.lane.b32.xlu0 %v507, 127
  %v525 = vpop.permute.xlu0 %524
  %vm526 = vcmask 1039360
  %v527 = vsel %vm526, %v515, %v517
  %v528 = vsel %vm526, %v517, %v519
  %v529 = vsel %vm526, %v521, %v523
  %v530 = vsel %vm526, %v523, %v525
  %v535 = vsel %vm387, %v527, 0.0
  %v536 = vsel %vm388, %v528, 0.0
  %v537 = vsel %vm387, %v529, 0.0
  %v538 = vsel %vm388, %v530, 0.0
  %s539 = scalar_lea.vmem %s3, 80
  %v540 = vld [vmem:[%s539] sm:$0xff]
  %v541 = vld [vmem:[%s539 + $0x8] sm:$0xff]
  %543 = vset.pattern.permute.xlu0 0
  %544 = vperm.xlu0 %543, %v540
  %v545 = vpop.permute.xlu0 %544
  %548 = vset.pattern.permute.xlu0 0
  %549 = vperm.xlu0 %548, %v541
  %v550 = vpop.permute.xlu0 %549
  %v552 = vmul.f32 %v535, %v545
  %v553 = vmul.f32 %v536, %v545
  %v554 = vmul.f32 %v537, %v550
  %v555 = vmul.f32 %v538, %v550
  %v556 = vadd.f32 %v498, %v552
  %v557 = vadd.f32 %v499, %v553
  %v558 = vadd.f32 %v500, %v554
  %v559 = vadd.f32 %v501, %v555
  %560 = vrot.lane.b32.xlu0 %v502, 113
  %v561 = vpop.permute.xlu0 %560
  %562 = vrot.lane.b32.xlu0 %v503, 113
  %v563 = vpop.permute.xlu0 %562
  %564 = vrot.lane.b32.xlu0 %v504, 113
  %v565 = vpop.permute.xlu0 %564
  %566 = vrot.lane.b32.xlu0 %v505, 113
  %v567 = vpop.permute.xlu0 %566
  %568 = vrot.lane.b32.xlu0 %v506, 113
  %v569 = vpop.permute.xlu0 %568
  %570 = vrot.lane.b32.xlu0 %v507, 113
  %v571 = vpop.permute.xlu0 %570
  %vm572 = vcmask 924672
  %v573 = vsel %vm572, %v561, %v563
  %v574 = vsel %vm572, %v563, %v565
  %v575 = vsel %vm572, %v567, %v569
  %v576 = vsel %vm572, %v569, %v571
  %v581 = vsel %vm282, %v573, 0.0
  %v582 = vsel %vm283, %v574, 0.0
  %v583 = vsel %vm282, %v575, 0.0
  %v584 = vsel %vm283, %v576, 0.0
  %s585 = scalar_lea.vmem %s3, 96
  %v586 = vld [vmem:[%s585] sm:$0xff]
  %v587 = vld [vmem:[%s585 + $0x8] sm:$0xff]
  %589 = vset.pattern.permute.xlu0 0
  %590 = vperm.xlu0 %589, %v586
  %v591 = vpop.permute.xlu0 %590
  %594 = vset.pattern.permute.xlu0 0
  %595 = vperm.xlu0 %594, %v587
  %v596 = vpop.permute.xlu0 %595
  %v598 = vmul.f32 %v581, %v591
  %v599 = vmul.f32 %v582, %v591
  %v600 = vmul.f32 %v583, %v596
  %v601 = vmul.f32 %v584, %v596
  %v602 = vadd.f32 %v556, %v598
  %v603 = vadd.f32 %v557, %v599
  %v604 = vadd.f32 %v558, %v600
  %v605 = vadd.f32 %v559, %v601
  %s606 = scalar_lea.vmem %s3, 112
  %v607 = vld [vmem:[%s606] sm:$0xff]
  %v608 = vld [vmem:[%s606 + $0x8] sm:$0xff]
  %610 = vset.pattern.permute.xlu0 0
  %611 = vperm.xlu0 %610, %v607
  %v612 = vpop.permute.xlu0 %611
  %615 = vset.pattern.permute.xlu0 0
  %616 = vperm.xlu0 %615, %v608
  %v617 = vpop.permute.xlu0 %616
  %v619 = vmul.f32 %v502, %v612
  %v620 = vmul.f32 %v503, %v612
  %v621 = vmul.f32 %v504, %v612
  %v622 = vmul.f32 %v505, %v617
  %v623 = vmul.f32 %v506, %v617
  %v624 = vmul.f32 %v507, %v617
  %631 = vrot.lane.b32.xlu0 %v619, 112
  %v632 = vpop.permute.xlu0 %631
  %633 = vrot.lane.b32.xlu0 %v620, 112
  %v634 = vpop.permute.xlu0 %633
  %635 = vrot.lane.b32.xlu0 %v621, 112
  %v636 = vpop.permute.xlu0 %635
  %637 = vrot.lane.b32.xlu0 %v622, 112
  %v638 = vpop.permute.xlu0 %637
  %639 = vrot.lane.b32.xlu0 %v623, 112
  %v640 = vpop.permute.xlu0 %639
  %641 = vrot.lane.b32.xlu0 %v624, 112
  %v642 = vpop.permute.xlu0 %641
  %vm643 = vcmask 916480
  %v644 = vsel %vm643, %v632, %v634
  %v645 = vsel %vm643, %v634, %v636
  %v646 = vsel %vm643, %v638, %v640
  %v647 = vsel %vm643, %v640, %v642
  %v652 = vadd.f32 %v602, %v644
  %v653 = vadd.f32 %v603, %v645
  %v654 = vadd.f32 %v604, %v646
  %v655 = vadd.f32 %v605, %v647
  %656 = vrot.lane.b32.xlu0 %v502, 111
  %v657 = vpop.permute.xlu0 %656
  %658 = vrot.lane.b32.xlu0 %v503, 111
  %v659 = vpop.permute.xlu0 %658
  %660 = vrot.lane.b32.xlu0 %v504, 111
  %v661 = vpop.permute.xlu0 %660
  %662 = vrot.lane.b32.xlu0 %v505, 111
  %v663 = vpop.permute.xlu0 %662
  %664 = vrot.lane.b32.xlu0 %v506, 111
  %v665 = vpop.permute.xlu0 %664
  %666 = vrot.lane.b32.xlu0 %v507, 111
  %v667 = vpop.permute.xlu0 %666
  %vm668 = vcmask 908288
  %v669 = vsel %vm668, %v657, %v659
  %v670 = vsel %vm668, %v659, %v661
  %v671 = vsel %vm668, %v663, %v665
  %v672 = vsel %vm668, %v665, %v667
  %v677 = vsel %vm387, %v669, 0.0
  %v678 = vsel %vm388, %v670, 0.0
  %v679 = vsel %vm387, %v671, 0.0
  %v680 = vsel %vm388, %v672, 0.0
  %s681 = scalar_lea.vmem %s3, 128
  %v682 = vld [vmem:[%s681] sm:$0xff]
  %v683 = vld [vmem:[%s681 + $0x8] sm:$0xff]
  %685 = vset.pattern.permute.xlu0 0
  %686 = vperm.xlu0 %685, %v682
  %v687 = vpop.permute.xlu0 %686
  %690 = vset.pattern.permute.xlu0 0
  %691 = vperm.xlu0 %690, %v683
  %v692 = vpop.permute.xlu0 %691
  %v694 = vmul.f32 %v677, %v687
  %v695 = vmul.f32 %v678, %v687
  %v696 = vmul.f32 %v679, %v692
  %v697 = vmul.f32 %v680, %v692
  %v698 = vadd.f32 %v652, %v694
  %v699 = vadd.f32 %v653, %v695
  %v700 = vadd.f32 %v654, %v696
  %v701 = vadd.f32 %v655, %v697
  %v702 = vld [vmem:[%s4] sm:$0xff]
  %v703 = vld [vmem:[%s4 + $0x8] sm:$0xff]
  %705 = vset.pattern.permute.xlu0 0
  %706 = vperm.xlu0 %705, %v702
  %v707 = vpop.permute.xlu0 %706
  %710 = vset.pattern.permute.xlu0 0
  %711 = vperm.xlu0 %710, %v703
  %v712 = vpop.permute.xlu0 %711
  %v714 = vadd.f32 %v698, %v707
  %v715 = vadd.f32 %v699, %v707
  %v716 = vadd.f32 %v700, %v712
  %v717 = vadd.f32 %v701, %v712
  %v718 = vxor.u32 %v714, 2147483648
  %v719 = vxor.u32 %v715, 2147483648
  %v720 = vxor.u32 %v716, 2147483648
  %v721 = vxor.u32 %v717, 2147483648
  %v722 = vmul.f32 %v718, 1.442695
  %v723 = vpow.pop %v722
  %v724 = vmul.f32 %v719, 1.442695
  %v725 = vpow.pop %v724
  %v726 = vmul.f32 %v720, 1.442695
  %v727 = vpow.pop %v726
  %v728 = vmul.f32 %v721, 1.442695
  %v729 = vpow.pop %v728
  %v730 = vadd.f32 %v723, 1.0
  %v731 = vadd.f32 %v725, 1.0
  %v732 = vadd.f32 %v727, 1.0
  %v733 = vadd.f32 %v729, 1.0
  %v734 = vrcp.pop %v730
  %v735 = vmul.f32 %v730, %v734
  %v736 = vsub.f32 1.0, %v735
  %v737 = vmul.f32 %v734, %v736
  %v738 = vadd.f32 %v734, %v737
  %vm739 = vweird.f32 %v730
  %vm740 = vweird.f32 %v734
  %vm741 = vmor %vm739, %vm740
  %v742 = vsel %vm741, %v734, %v738
  %v743 = vand.u32 2147483647, %v730
  %vm744 = vcmp.eq.f32.partialorder %v743, 8.507059e+37
  %v745 = vand.u32 %v730, 2147483648
  %v746 = vor.u32 1.1754944e-38, %v745
  %v747 = vsel %vm744, %v746, %v742
  %v748 = vmul.f32 1.0, %v747
  %v749 = vrcp.pop %v731
  %v750 = vmul.f32 %v731, %v749
  %v751 = vsub.f32 1.0, %v750
  %v752 = vmul.f32 %v749, %v751
  %v753 = vadd.f32 %v749, %v752
  %vm754 = vweird.f32 %v731
  %vm755 = vweird.f32 %v749
  %vm756 = vmor %vm754, %vm755
  %v757 = vsel %vm756, %v749, %v753
  %v758 = vand.u32 2147483647, %v731
  %vm759 = vcmp.eq.f32.partialorder %v758, 8.507059e+37
  %v760 = vand.u32 %v731, 2147483648
  %v761 = vor.u32 1.1754944e-38, %v760
  %v762 = vsel %vm759, %v761, %v757
  %v763 = vmul.f32 1.0, %v762
  %v764 = vrcp.pop %v732
  %v765 = vmul.f32 %v732, %v764
  %v766 = vsub.f32 1.0, %v765
  %v767 = vmul.f32 %v764, %v766
  %v768 = vadd.f32 %v764, %v767
  %vm769 = vweird.f32 %v732
  %vm770 = vweird.f32 %v764
  %vm771 = vmor %vm769, %vm770
  %v772 = vsel %vm771, %v764, %v768
  %v773 = vand.u32 2147483647, %v732
  %vm774 = vcmp.eq.f32.partialorder %v773, 8.507059e+37
  %v775 = vand.u32 %v732, 2147483648
  %v776 = vor.u32 1.1754944e-38, %v775
  %v777 = vsel %vm774, %v776, %v772
  %v778 = vmul.f32 1.0, %v777
  %v779 = vrcp.pop %v733
  %v780 = vmul.f32 %v733, %v779
  %v781 = vsub.f32 1.0, %v780
  %v782 = vmul.f32 %v779, %v781
  %v783 = vadd.f32 %v779, %v782
  %vm784 = vweird.f32 %v733
  %vm785 = vweird.f32 %v779
  %vm786 = vmor %vm784, %vm785
  %v787 = vsel %vm786, %v779, %v783
  %v788 = vand.u32 2147483647, %v733
  %vm789 = vcmp.eq.f32.partialorder %v788, 8.507059e+37
  %v790 = vand.u32 %v733, 2147483648
  %v791 = vor.u32 1.1754944e-38, %v790
  %v792 = vsel %vm789, %v791, %v787
  %v793 = vmul.f32 1.0, %v792
  %v794 = vmul.f32 %v714, %v748
  %v795 = vmul.f32 %v715, %v763
  %v796 = vmul.f32 %v716, %v778
  %v797 = vmul.f32 %v717, %v793
  %v798 = vld [vmem:[%s5] sm:$0xf]
  %800 = vset.pattern.permute.xlu0 0
  %801 = vperm.xlu0 %800, %v798
  %v802 = vpop.permute.xlu0 %801
  %v804 = vperm.slane %v794, 0
  %v805 = vperm.slane %v795, 0
  %v806 = vmul.f32 %v802, %v804
  %v807 = vmul.f32 %v802, %v805
  %v808 = vadd.f32 %v806, 0.0
  %v809 = vadd.f32 %v807, 0.0
  %s810 = scalar_lea.vmem %s5, 4
  %v811 = vld [vmem:[%s810] sm:$0xf]
  %813 = vset.pattern.permute.xlu0 0
  %814 = vperm.xlu0 %813, %v811
  %v815 = vpop.permute.xlu0 %814
  %v817 = vperm.slane %v794, 1
  %v818 = vperm.slane %v795, 1
  %v819 = vmul.f32 %v815, %v817
  %v820 = vmul.f32 %v815, %v818
  %v821 = vadd.f32 %v808, %v819
  %v822 = vadd.f32 %v809, %v820
  %s823 = scalar_lea.vmem %s5, 8
  %v824 = vld [vmem:[%s823] sm:$0xf]
  %826 = vset.pattern.permute.xlu0 0
  %827 = vperm.xlu0 %826, %v824
  %v828 = vpop.permute.xlu0 %827
  %v830 = vperm.slane %v794, 2
  %v831 = vperm.slane %v795, 2
  %v832 = vmul.f32 %v828, %v830
  %v833 = vmul.f32 %v828, %v831
  %v834 = vadd.f32 %v821, %v832
  %v835 = vadd.f32 %v822, %v833
  %s836 = scalar_lea.vmem %s5, 12
  %v837 = vld [vmem:[%s836] sm:$0xf]
  %839 = vset.pattern.permute.xlu0 0
  %840 = vperm.xlu0 %839, %v837
  %v841 = vpop.permute.xlu0 %840
  %v843 = vperm.slane %v794, 3
  %v844 = vperm.slane %v795, 3
  %v845 = vmul.f32 %v841, %v843
  %v846 = vmul.f32 %v841, %v844
  %v847 = vadd.f32 %v834, %v845
  %v848 = vadd.f32 %v835, %v846
  %s849 = scalar_lea.vmem %s5, 16
  %v850 = vld [vmem:[%s849] sm:$0xf]
  %852 = vset.pattern.permute.xlu0 0
  %853 = vperm.xlu0 %852, %v850
  %v854 = vpop.permute.xlu0 %853
  %v856 = vperm.slane %v794, 4
  %v857 = vperm.slane %v795, 4
  %v858 = vmul.f32 %v854, %v856
  %v859 = vmul.f32 %v854, %v857
  %v860 = vadd.f32 %v847, %v858
  %v861 = vadd.f32 %v848, %v859
  %s862 = scalar_lea.vmem %s5, 20
  %v863 = vld [vmem:[%s862] sm:$0xf]
  %865 = vset.pattern.permute.xlu0 0
  %866 = vperm.xlu0 %865, %v863
  %v867 = vpop.permute.xlu0 %866
  %v869 = vperm.slane %v794, 5
  %v870 = vperm.slane %v795, 5
  %v871 = vmul.f32 %v867, %v869
  %v872 = vmul.f32 %v867, %v870
  %v873 = vadd.f32 %v860, %v871
  %v874 = vadd.f32 %v861, %v872
  %s875 = scalar_lea.vmem %s5, 24
  %v876 = vld [vmem:[%s875] sm:$0xf]
  %878 = vset.pattern.permute.xlu0 0
  %879 = vperm.xlu0 %878, %v876
  %v880 = vpop.permute.xlu0 %879
  %v882 = vperm.slane %v794, 6
  %v883 = vperm.slane %v795, 6
  %v884 = vmul.f32 %v880, %v882
  %v885 = vmul.f32 %v880, %v883
  %v886 = vadd.f32 %v873, %v884
  %v887 = vadd.f32 %v874, %v885
  %s888 = scalar_lea.vmem %s5, 28
  %v889 = vld [vmem:[%s888] sm:$0xf]
  %891 = vset.pattern.permute.xlu0 0
  %892 = vperm.xlu0 %891, %v889
  %v893 = vpop.permute.xlu0 %892
  %v895 = vperm.slane %v794, 7
  %v896 = vperm.slane %v795, 7
  %v897 = vmul.f32 %v893, %v895
  %v898 = vmul.f32 %v893, %v896
  %v899 = vadd.f32 %v886, %v897
  %v900 = vadd.f32 %v887, %v898
  %s901 = scalar_lea.vmem %s5, 32
  %v902 = vld [vmem:[%s901] sm:$0xf]
  %904 = vset.pattern.permute.xlu0 0
  %905 = vperm.xlu0 %904, %v902
  %v906 = vpop.permute.xlu0 %905
  %v908 = vperm.slane %v796, 0
  %v909 = vperm.slane %v797, 0
  %v910 = vmul.f32 %v906, %v908
  %v911 = vmul.f32 %v906, %v909
  %v912 = vadd.f32 %v899, %v910
  %v913 = vadd.f32 %v900, %v911
  %s914 = scalar_lea.vmem %s5, 36
  %v915 = vld [vmem:[%s914] sm:$0xf]
  %917 = vset.pattern.permute.xlu0 0
  %918 = vperm.xlu0 %917, %v915
  %v919 = vpop.permute.xlu0 %918
  %v921 = vperm.slane %v796, 1
  %v922 = vperm.slane %v797, 1
  %v923 = vmul.f32 %v919, %v921
  %v924 = vmul.f32 %v919, %v922
  %v925 = vadd.f32 %v912, %v923
  %v926 = vadd.f32 %v913, %v924
  %s927 = scalar_lea.vmem %s5, 40
  %v928 = vld [vmem:[%s927] sm:$0xf]
  %930 = vset.pattern.permute.xlu0 0
  %931 = vperm.xlu0 %930, %v928
  %v932 = vpop.permute.xlu0 %931
  %v934 = vperm.slane %v796, 2
  %v935 = vperm.slane %v797, 2
  %v936 = vmul.f32 %v932, %v934
  %v937 = vmul.f32 %v932, %v935
  %v938 = vadd.f32 %v925, %v936
  %v939 = vadd.f32 %v926, %v937
  %s940 = scalar_lea.vmem %s5, 44
  %v941 = vld [vmem:[%s940] sm:$0xf]
  %943 = vset.pattern.permute.xlu0 0
  %944 = vperm.xlu0 %943, %v941
  %v945 = vpop.permute.xlu0 %944
  %v947 = vperm.slane %v796, 3
  %v948 = vperm.slane %v797, 3
  %v949 = vmul.f32 %v945, %v947
  %v950 = vmul.f32 %v945, %v948
  %v951 = vadd.f32 %v938, %v949
  %v952 = vadd.f32 %v939, %v950
  %s953 = scalar_lea.vmem %s5, 48
  %v954 = vld [vmem:[%s953] sm:$0xf]
  %956 = vset.pattern.permute.xlu0 0
  %957 = vperm.xlu0 %956, %v954
  %v958 = vpop.permute.xlu0 %957
  %v960 = vperm.slane %v796, 4
  %v961 = vperm.slane %v797, 4
  %v962 = vmul.f32 %v958, %v960
  %v963 = vmul.f32 %v958, %v961
  %v964 = vadd.f32 %v951, %v962
  %v965 = vadd.f32 %v952, %v963
  %s966 = scalar_lea.vmem %s5, 52
  %v967 = vld [vmem:[%s966] sm:$0xf]
  %969 = vset.pattern.permute.xlu0 0
  %970 = vperm.xlu0 %969, %v967
  %v971 = vpop.permute.xlu0 %970
  %v973 = vperm.slane %v796, 5
  %v974 = vperm.slane %v797, 5
  %v975 = vmul.f32 %v971, %v973
  %v976 = vmul.f32 %v971, %v974
  %v977 = vadd.f32 %v964, %v975
  %v978 = vadd.f32 %v965, %v976
  %s979 = scalar_lea.vmem %s5, 56
  %v980 = vld [vmem:[%s979] sm:$0xf]
  %982 = vset.pattern.permute.xlu0 0
  %983 = vperm.xlu0 %982, %v980
  %v984 = vpop.permute.xlu0 %983
  %v986 = vperm.slane %v796, 6
  %v987 = vperm.slane %v797, 6
  %v988 = vmul.f32 %v984, %v986
  %v989 = vmul.f32 %v984, %v987
  %v990 = vadd.f32 %v977, %v988
  %v991 = vadd.f32 %v978, %v989
  %s992 = scalar_lea.vmem %s5, 60
  %v993 = vld [vmem:[%s992] sm:$0xf]
  %995 = vset.pattern.permute.xlu0 0
  %996 = vperm.xlu0 %995, %v993
  %v997 = vpop.permute.xlu0 %996
  %v999 = vperm.slane %v796, 7
  %v1000 = vperm.slane %v797, 7
  %v1001 = vmul.f32 %v997, %v999
  %v1002 = vmul.f32 %v997, %v1000
  %v1003 = vadd.f32 %v990, %v1001
  %v1004 = vadd.f32 %v991, %v1002
  %v1005 = vld [vmem:[%s6] sm:$0xf]
  %1007 = vset.pattern.permute.xlu0 0
  %1008 = vperm.xlu0 %1007, %v1005
  %v1009 = vpop.permute.xlu0 %1008
  %v1011 = vadd.f32 %v1003, %v1009
  %v1012 = vadd.f32 %v1004, %v1009
  %1013 = vst [vmem:[#allocation1] ss:$2 sm:$0xff] %v65
  %v1014 = vld.sshfl [vmem:[#allocation1] sm:$0xff pattern:$0x75316420]
  %v1015 = vld.sshfl [vmem:[#allocation1 + $0x8] sm:$0xff pattern:$0x75316420]
  %v1018 = vadd.f32 %v1011, %v1014
  %v1019 = vadd.f32 %v1012, %v1015
  %v1022 = vrot.slane %v1019, 4
  %vm1023 = vcmask 1043456
  %v1024 = vsel %vm1023, %v1018, %v1022
  %1026 = vst [vmem:[%s7] sm:$0xff] %v1024
  %s1027 = scalar_lea.vmem %s0, 8
  %v1028 = vld [vmem:[%s1027] sm:$0xff]
  %v1029 = vld [vmem:[%s1] sm:$0xff]
  %v1030 = vld [vmem:[%s1 + $0x8] sm:$0xff]
  %1032 = vset.pattern.permute.xlu0 0
  %1033 = vperm.xlu0 %1032, %v1029
  %v1034 = vpop.permute.xlu0 %1033
  %1037 = vset.pattern.permute.xlu0 0
  %1038 = vperm.xlu0 %1037, %v1030
  %v1039 = vpop.permute.xlu0 %1038
  %v1042 = vperm.slane %v1028, 0
  %v1043 = vperm.slane %v1028, 4
  %v1046 = vperm.slane %v1042, 0
  %v1047 = vperm.slane %v1043, 0
  %v1048 = vmul.f32 %v1034, %v1046
  %v1049 = vmul.f32 %v1034, %v1047
  %v1050 = vmul.f32 %v1039, %v1046
  %v1051 = vmul.f32 %v1039, %v1047
  %v1052 = vadd.f32 %v1048, 0.0
  %v1053 = vadd.f32 %v1049, 0.0
  %v1054 = vadd.f32 %v1050, 0.0
  %v1055 = vadd.f32 %v1051, 0.0
  %v1056 = vld [vmem:[%s93] sm:$0xff]
  %v1057 = vld [vmem:[%s93 + $0x8] sm:$0xff]
  %1059 = vset.pattern.permute.xlu0 0
  %1060 = vperm.xlu0 %1059, %v1056
  %v1061 = vpop.permute.xlu0 %1060
  %1064 = vset.pattern.permute.xlu0 0
  %1065 = vperm.xlu0 %1064, %v1057
  %v1066 = vpop.permute.xlu0 %1065
  %v1068 = vperm.slane %v1028, 1
  %v1069 = vperm.slane %v1028, 5
  %v1072 = vperm.slane %v1068, 1
  %v1073 = vperm.slane %v1069, 1
  %v1074 = vmul.f32 %v1061, %v1072
  %v1075 = vmul.f32 %v1061, %v1073
  %v1076 = vmul.f32 %v1066, %v1072
  %v1077 = vmul.f32 %v1066, %v1073
  %v1078 = vadd.f32 %v1052, %v1074
  %v1079 = vadd.f32 %v1053, %v1075
  %v1080 = vadd.f32 %v1054, %v1076
  %v1081 = vadd.f32 %v1055, %v1077
  %v1082 = vld [vmem:[%s120] sm:$0xff]
  %v1083 = vld [vmem:[%s120 + $0x8] sm:$0xff]
  %1085 = vset.pattern.permute.xlu0 0
  %1086 = vperm.xlu0 %1085, %v1082
  %v1087 = vpop.permute.xlu0 %1086
  %1090 = vset.pattern.permute.xlu0 0
  %1091 = vperm.xlu0 %1090, %v1083
  %v1092 = vpop.permute.xlu0 %1091
  %v1094 = vperm.slane %v1028, 2
  %v1095 = vperm.slane %v1028, 6
  %v1098 = vperm.slane %v1094, 2
  %v1099 = vperm.slane %v1095, 2
  %v1100 = vmul.f32 %v1087, %v1098
  %v1101 = vmul.f32 %v1087, %v1099
  %v1102 = vmul.f32 %v1092, %v1098
  %v1103 = vmul.f32 %v1092, %v1099
  %v1104 = vadd.f32 %v1078, %v1100
  %v1105 = vadd.f32 %v1079, %v1101
  %v1106 = vadd.f32 %v1080, %v1102
  %v1107 = vadd.f32 %v1081, %v1103
  %v1108 = vld [vmem:[%s147] sm:$0xff]
  %v1109 = vld [vmem:[%s147 + $0x8] sm:$0xff]
  %1111 = vset.pattern.permute.xlu0 0
  %1112 = vperm.xlu0 %1111, %v1108
  %v1113 = vpop.permute.xlu0 %1112
  %1116 = vset.pattern.permute.xlu0 0
  %1117 = vperm.xlu0 %1116, %v1109
  %v1118 = vpop.permute.xlu0 %1117
  %v1120 = vperm.slane %v1028, 3
  %v1121 = vperm.slane %v1028, 7
  %v1124 = vperm.slane %v1120, 3
  %v1125 = vperm.slane %v1121, 3
  %v1126 = vmul.f32 %v1113, %v1124
  %v1127 = vmul.f32 %v1113, %v1125
  %v1128 = vmul.f32 %v1118, %v1124
  %v1129 = vmul.f32 %v1118, %v1125
  %v1130 = vadd.f32 %v1104, %v1126
  %v1131 = vadd.f32 %v1105, %v1127
  %v1132 = vadd.f32 %v1106, %v1128
  %v1133 = vadd.f32 %v1107, %v1129
  %v1134 = vld [vmem:[%s2] sm:$0xff]
  %v1135 = vld [vmem:[%s2 + $0x8] sm:$0xff]
  %1137 = vset.pattern.permute.xlu0 0
  %1138 = vperm.xlu0 %1137, %v1134
  %v1139 = vpop.permute.xlu0 %1138
  %1142 = vset.pattern.permute.xlu0 0
  %1143 = vperm.xlu0 %1142, %v1135
  %v1144 = vpop.permute.xlu0 %1143
  %v1146 = vadd.f32 %v1130, %v1139
  %v1147 = vadd.f32 %v1131, %v1139
  %v1148 = vadd.f32 %v1132, %v1144
  %v1149 = vadd.f32 %v1133, %v1144
  %v1150 = vxor.u32 %v1146, 2147483648
  %v1151 = vxor.u32 %v1147, 2147483648
  %v1152 = vxor.u32 %v1148, 2147483648
  %v1153 = vxor.u32 %v1149, 2147483648
  %v1154 = vmul.f32 %v1150, 1.442695
  %v1155 = vpow.pop %v1154
  %v1156 = vmul.f32 %v1151, 1.442695
  %v1157 = vpow.pop %v1156
  %v1158 = vmul.f32 %v1152, 1.442695
  %v1159 = vpow.pop %v1158
  %v1160 = vmul.f32 %v1153, 1.442695
  %v1161 = vpow.pop %v1160
  %v1162 = vadd.f32 %v1155, 1.0
  %v1163 = vadd.f32 %v1157, 1.0
  %v1164 = vadd.f32 %v1159, 1.0
  %v1165 = vadd.f32 %v1161, 1.0
  %v1166 = vrcp.pop %v1162
  %v1167 = vmul.f32 %v1162, %v1166
  %v1168 = vsub.f32 1.0, %v1167
  %v1169 = vmul.f32 %v1166, %v1168
  %v1170 = vadd.f32 %v1166, %v1169
  %vm1171 = vweird.f32 %v1162
  %vm1172 = vweird.f32 %v1166
  %vm1173 = vmor %vm1171, %vm1172
  %v1174 = vsel %vm1173, %v1166, %v1170
  %v1175 = vand.u32 2147483647, %v1162
  %vm1176 = vcmp.eq.f32.partialorder %v1175, 8.507059e+37
  %v1177 = vand.u32 %v1162, 2147483648
  %v1178 = vor.u32 1.1754944e-38, %v1177
  %v1179 = vsel %vm1176, %v1178, %v1174
  %v1180 = vmul.f32 1.0, %v1179
  %v1181 = vrcp.pop %v1163
  %v1182 = vmul.f32 %v1163, %v1181
  %v1183 = vsub.f32 1.0, %v1182
  %v1184 = vmul.f32 %v1181, %v1183
  %v1185 = vadd.f32 %v1181, %v1184
  %vm1186 = vweird.f32 %v1163
  %vm1187 = vweird.f32 %v1181
  %vm1188 = vmor %vm1186, %vm1187
  %v1189 = vsel %vm1188, %v1181, %v1185
  %v1190 = vand.u32 2147483647, %v1163
  %vm1191 = vcmp.eq.f32.partialorder %v1190, 8.507059e+37
  %v1192 = vand.u32 %v1163, 2147483648
  %v1193 = vor.u32 1.1754944e-38, %v1192
  %v1194 = vsel %vm1191, %v1193, %v1189
  %v1195 = vmul.f32 1.0, %v1194
  %v1196 = vrcp.pop %v1164
  %v1197 = vmul.f32 %v1164, %v1196
  %v1198 = vsub.f32 1.0, %v1197
  %v1199 = vmul.f32 %v1196, %v1198
  %v1200 = vadd.f32 %v1196, %v1199
  %vm1201 = vweird.f32 %v1164
  %vm1202 = vweird.f32 %v1196
  %vm1203 = vmor %vm1201, %vm1202
  %v1204 = vsel %vm1203, %v1196, %v1200
  %v1205 = vand.u32 2147483647, %v1164
  %vm1206 = vcmp.eq.f32.partialorder %v1205, 8.507059e+37
  %v1207 = vand.u32 %v1164, 2147483648
  %v1208 = vor.u32 1.1754944e-38, %v1207
  %v1209 = vsel %vm1206, %v1208, %v1204
  %v1210 = vmul.f32 1.0, %v1209
  %v1211 = vrcp.pop %v1165
  %v1212 = vmul.f32 %v1165, %v1211
  %v1213 = vsub.f32 1.0, %v1212
  %v1214 = vmul.f32 %v1211, %v1213
  %v1215 = vadd.f32 %v1211, %v1214
  %vm1216 = vweird.f32 %v1165
  %vm1217 = vweird.f32 %v1211
  %vm1218 = vmor %vm1216, %vm1217
  %v1219 = vsel %vm1218, %v1211, %v1215
  %v1220 = vand.u32 2147483647, %v1165
  %vm1221 = vcmp.eq.f32.partialorder %v1220, 8.507059e+37
  %v1222 = vand.u32 %v1165, 2147483648
  %v1223 = vor.u32 1.1754944e-38, %v1222
  %v1224 = vsel %vm1221, %v1223, %v1219
  %v1225 = vmul.f32 1.0, %v1224
  %v1226 = vmul.f32 %v1146, %v1180
  %v1227 = vmul.f32 %v1147, %v1195
  %v1228 = vmul.f32 %v1148, %v1210
  %v1229 = vmul.f32 %v1149, %v1225
  %1230 = vst [vmem:[#allocation2 + $0x8] sm:$0xff] %v1226
  %1231 = vst [vmem:[#allocation2 + $0x10] sm:$0xff] %v1227
  %1232 = vst [vmem:[#allocation2 + $0x28] sm:$0xff] %v1228
  %1233 = vst [vmem:[#allocation2 + $0x30] sm:$0xff] %v1229
  %v1234 = vld [vmem:[#allocation2] sm:$0xff]
  %v1235 = vld [vmem:[#allocation2 + $0x8] sm:$0xff]
  %v1236 = vld [vmem:[#allocation2 + $0x10] sm:$0xff]
  %v1237 = vld [vmem:[#allocation2 + $0x20] sm:$0xff]
  %v1238 = vld [vmem:[#allocation2 + $0x28] sm:$0xff]
  %v1239 = vld [vmem:[#allocation2 + $0x30] sm:$0xff]
  %1246 = vrot.lane.b32.xlu0 %v1234, 17
  %v1247 = vpop.permute.xlu0 %1246
  %1248 = vrot.lane.b32.xlu0 %v1235, 17
  %v1249 = vpop.permute.xlu0 %1248
  %1250 = vrot.lane.b32.xlu0 %v1236, 17
  %v1251 = vpop.permute.xlu0 %1250
  %1252 = vrot.lane.b32.xlu0 %v1237, 17
  %v1253 = vpop.permute.xlu0 %1252
  %1254 = vrot.lane.b32.xlu0 %v1238, 17
  %v1255 = vpop.permute.xlu0 %1254
  %1256 = vrot.lane.b32.xlu0 %v1239, 17
  %v1257 = vpop.permute.xlu0 %1256
  %v1258 = vsel %vm302, %v1247, %v1249
  %v1259 = vsel %vm302, %v1249, %v1251
  %v1260 = vsel %vm302, %v1253, %v1255
  %v1261 = vsel %vm302, %v1255, %v1257
  %v1266 = vsel %vm282, %v1258, 0.0
  %v1267 = vsel %vm283, %v1259, 0.0
  %v1268 = vsel %vm282, %v1260, 0.0
  %v1269 = vsel %vm283, %v1261, 0.0
  %v1270 = vld [vmem:[%s3] sm:$0xff]
  %v1271 = vld [vmem:[%s3 + $0x8] sm:$0xff]
  %1273 = vset.pattern.permute.xlu0 0
  %1274 = vperm.xlu0 %1273, %v1270
  %v1275 = vpop.permute.xlu0 %1274
  %1278 = vset.pattern.permute.xlu0 0
  %1279 = vperm.xlu0 %1278, %v1271
  %v1280 = vpop.permute.xlu0 %1279
  %v1282 = vmul.f32 %v1266, %v1275
  %v1283 = vmul.f32 %v1267, %v1275
  %v1284 = vmul.f32 %v1268, %v1280
  %v1285 = vmul.f32 %v1269, %v1280
  %v1286 = vadd.f32 %v1282, 0.0
  %v1287 = vadd.f32 %v1283, 0.0
  %v1288 = vadd.f32 %v1284, 0.0
  %v1289 = vadd.f32 %v1285, 0.0
  %v1290 = vld [vmem:[%s335] sm:$0xff]
  %v1291 = vld [vmem:[%s335 + $0x8] sm:$0xff]
  %1293 = vset.pattern.permute.xlu0 0
  %1294 = vperm.xlu0 %1293, %v1290
  %v1295 = vpop.permute.xlu0 %1294
  %1298 = vset.pattern.permute.xlu0 0
  %1299 = vperm.xlu0 %1298, %v1291
  %v1300 = vpop.permute.xlu0 %1299
  %v1302 = vmul.f32 %v1234, %v1295
  %v1303 = vmul.f32 %v1235, %v1295
  %v1304 = vmul.f32 %v1236, %v1295
  %v1305 = vmul.f32 %v1237, %v1300
  %v1306 = vmul.f32 %v1238, %v1300
  %v1307 = vmul.f32 %v1239, %v1300
  %1314 = vrot.lane.b32.xlu0 %v1302, 16
  %v1315 = vpop.permute.xlu0 %1314
  %1316 = vrot.lane.b32.xlu0 %v1303, 16
  %v1317 = vpop.permute.xlu0 %1316
  %1318 = vrot.lane.b32.xlu0 %v1304, 16
  %v1319 = vpop.permute.xlu0 %1318
  %1320 = vrot.lane.b32.xlu0 %v1305, 16
  %v1321 = vpop.permute.xlu0 %1320
  %1322 = vrot.lane.b32.xlu0 %v1306, 16
  %v1323 = vpop.permute.xlu0 %1322
  %1324 = vrot.lane.b32.xlu0 %v1307, 16
  %v1325 = vpop.permute.xlu0 %1324
  %v1326 = vsel %vm372, %v1315, %v1317
  %v1327 = vsel %vm372, %v1317, %v1319
  %v1328 = vsel %vm372, %v1321, %v1323
  %v1329 = vsel %vm372, %v1323, %v1325
  %v1334 = vadd.f32 %v1286, %v1326
  %v1335 = vadd.f32 %v1287, %v1327
  %v1336 = vadd.f32 %v1288, %v1328
  %v1337 = vadd.f32 %v1289, %v1329
  %1338 = vrot.lane.b32.xlu0 %v1234, 15
  %v1339 = vpop.permute.xlu0 %1338
  %1340 = vrot.lane.b32.xlu0 %v1235, 15
  %v1341 = vpop.permute.xlu0 %1340
  %1342 = vrot.lane.b32.xlu0 %v1236, 15
  %v1343 = vpop.permute.xlu0 %1342
  %1344 = vrot.lane.b32.xlu0 %v1237, 15
  %v1345 = vpop.permute.xlu0 %1344
  %1346 = vrot.lane.b32.xlu0 %v1238, 15
  %v1347 = vpop.permute.xlu0 %1346
  %1348 = vrot.lane.b32.xlu0 %v1239, 15
  %v1349 = vpop.permute.xlu0 %1348
  %v1350 = vsel %vm401, %v1339, %v1341
  %v1351 = vsel %vm401, %v1341, %v1343
  %v1352 = vsel %vm401, %v1345, %v1347
  %v1353 = vsel %vm401, %v1347, %v1349
  %v1358 = vsel %vm387, %v1350, 0.0
  %v1359 = vsel %vm388, %v1351, 0.0
  %v1360 = vsel %vm387, %v1352, 0.0
  %v1361 = vsel %vm388, %v1353, 0.0
  %v1362 = vld [vmem:[%s414] sm:$0xff]
  %v1363 = vld [vmem:[%s414 + $0x8] sm:$0xff]
  %1365 = vset.pattern.permute.xlu0 0
  %1366 = vperm.xlu0 %1365, %v1362
  %v1367 = vpop.permute.xlu0 %1366
  %1370 = vset.pattern.permute.xlu0 0
  %1371 = vperm.xlu0 %1370, %v1363
  %v1372 = vpop.permute.xlu0 %1371
  %v1374 = vmul.f32 %v1358, %v1367
  %v1375 = vmul.f32 %v1359, %v1367
  %v1376 = vmul.f32 %v1360, %v1372
  %v1377 = vmul.f32 %v1361, %v1372
  %v1378 = vadd.f32 %v1334, %v1374
  %v1379 = vadd.f32 %v1335, %v1375
  %v1380 = vadd.f32 %v1336, %v1376
  %v1381 = vadd.f32 %v1337, %v1377
  %1382 = vrot.lane.b32.xlu0 %v1234, 1
  %v1383 = vpop.permute.xlu0 %1382
  %1384 = vrot.lane.b32.xlu0 %v1235, 1
  %v1385 = vpop.permute.xlu0 %1384
  %1386 = vrot.lane.b32.xlu0 %v1236, 1
  %v1387 = vpop.permute.xlu0 %1386
  %1388 = vrot.lane.b32.xlu0 %v1237, 1
  %v1389 = vpop.permute.xlu0 %1388
  %1390 = vrot.lane.b32.xlu0 %v1238, 1
  %v1391 = vpop.permute.xlu0 %1390
  %1392 = vrot.lane.b32.xlu0 %v1239, 1
  %v1393 = vpop.permute.xlu0 %1392
  %v1394 = vsel %vm447, %v1383, %v1385
  %v1395 = vsel %vm447, %v1385, %v1387
  %v1396 = vsel %vm447, %v1389, %v1391
  %v1397 = vsel %vm447, %v1391, %v1393
  %v1402 = vsel %vm282, %v1394, 0.0
  %v1403 = vsel %vm283, %v1395, 0.0
  %v1404 = vsel %vm282, %v1396, 0.0
  %v1405 = vsel %vm283, %v1397, 0.0
  %v1406 = vld [vmem:[%s460] sm:$0xff]
  %v1407 = vld [vmem:[%s460 + $0x8] sm:$0xff]
  %1409 = vset.pattern.permute.xlu0 0
  %1410 = vperm.xlu0 %1409, %v1406
  %v1411 = vpop.permute.xlu0 %1410
  %1414 = vset.pattern.permute.xlu0 0
  %1415 = vperm.xlu0 %1414, %v1407
  %v1416 = vpop.permute.xlu0 %1415
  %v1418 = vmul.f32 %v1402, %v1411
  %v1419 = vmul.f32 %v1403, %v1411
  %v1420 = vmul.f32 %v1404, %v1416
  %v1421 = vmul.f32 %v1405, %v1416
  %v1422 = vadd.f32 %v1378, %v1418
  %v1423 = vadd.f32 %v1379, %v1419
  %v1424 = vadd.f32 %v1380, %v1420
  %v1425 = vadd.f32 %v1381, %v1421
  %v1426 = vld [vmem:[%s481] sm:$0xff]
  %v1427 = vld [vmem:[%s481 + $0x8] sm:$0xff]
  %1429 = vset.pattern.permute.xlu0 0
  %1430 = vperm.xlu0 %1429, %v1426
  %v1431 = vpop.permute.xlu0 %1430
  %1434 = vset.pattern.permute.xlu0 0
  %1435 = vperm.xlu0 %1434, %v1427
  %v1436 = vpop.permute.xlu0 %1435
  %v1438 = vmul.f32 %v1235, %v1431
  %v1439 = vmul.f32 %v1236, %v1431
  %v1440 = vmul.f32 %v1238, %v1436
  %v1441 = vmul.f32 %v1239, %v1436
  %v1442 = vadd.f32 %v1422, %v1438
  %v1443 = vadd.f32 %v1423, %v1439
  %v1444 = vadd.f32 %v1424, %v1440
  %v1445 = vadd.f32 %v1425, %v1441
  %v1446 = vld [vmem:[#allocation2 + $0x8] sm:$0xff]
  %v1447 = vld [vmem:[#allocation2 + $0x10] sm:$0xff]
  %v1448 = vld [vmem:[#allocation2 + $0x18] sm:$0xff]
  %v1449 = vld [vmem:[#allocation2 + $0x28] sm:$0xff]
  %v1450 = vld [vmem:[#allocation2 + $0x30] sm:$0xff]
  %v1451 = vld [vmem:[#allocation2 + $0x38] sm:$0xff]
  %1458 = vrot.lane.b32.xlu0 %v1446, 127
  %v1459 = vpop.permute.xlu0 %1458
  %1460 = vrot.lane.b32.xlu0 %v1447, 127
  %v1461 = vpop.permute.xlu0 %1460
  %1462 = vrot.lane.b32.xlu0 %v1448, 127
  %v1463 = vpop.permute.xlu0 %1462
  %1464 = vrot.lane.b32.xlu0 %v1449, 127
  %v1465 = vpop.permute.xlu0 %1464
  %1466 = vrot.lane.b32.xlu0 %v1450, 127
  %v1467 = vpop.permute.xlu0 %1466
  %1468 = vrot.lane.b32.xlu0 %v1451, 127
  %v1469 = vpop.permute.xlu0 %1468
  %v1470 = vsel %vm526, %v1459, %v1461
  %v1471 = vsel %vm526, %v1461, %v1463
  %v1472 = vsel %vm526, %v1465, %v1467
  %v1473 = vsel %vm526, %v1467, %v1469
  %v1478 = vsel %vm387, %v1470, 0.0
  %v1479 = vsel %vm388, %v1471, 0.0
  %v1480 = vsel %vm387, %v1472, 0.0
  %v1481 = vsel %vm388, %v1473, 0.0
  %v1482 = vld [vmem:[%s539] sm:$0xff]
  %v1483 = vld [vmem:[%s539 + $0x8] sm:$0xff]
  %1485 = vset.pattern.permute.xlu0 0
  %1486 = vperm.xlu0 %1485, %v1482
  %v1487 = vpop.permute.xlu0 %1486
  %1490 = vset.pattern.permute.xlu0 0
  %1491 = vperm.xlu0 %1490, %v1483
  %v1492 = vpop.permute.xlu0 %1491
  %v1494 = vmul.f32 %v1478, %v1487
  %v1495 = vmul.f32 %v1479, %v1487
  %v1496 = vmul.f32 %v1480, %v1492
  %v1497 = vmul.f32 %v1481, %v1492
  %v1498 = vadd.f32 %v1442, %v1494
  %v1499 = vadd.f32 %v1443, %v1495
  %v1500 = vadd.f32 %v1444, %v1496
  %v1501 = vadd.f32 %v1445, %v1497
  %1502 = vrot.lane.b32.xlu0 %v1446, 113
  %v1503 = vpop.permute.xlu0 %1502
  %1504 = vrot.lane.b32.xlu0 %v1447, 113
  %v1505 = vpop.permute.xlu0 %1504
  %1506 = vrot.lane.b32.xlu0 %v1448, 113
  %v1507 = vpop.permute.xlu0 %1506
  %1508 = vrot.lane.b32.xlu0 %v1449, 113
  %v1509 = vpop.permute.xlu0 %1508
  %1510 = vrot.lane.b32.xlu0 %v1450, 113
  %v1511 = vpop.permute.xlu0 %1510
  %1512 = vrot.lane.b32.xlu0 %v1451, 113
  %v1513 = vpop.permute.xlu0 %1512
  %v1514 = vsel %vm572, %v1503, %v1505
  %v1515 = vsel %vm572, %v1505, %v1507
  %v1516 = vsel %vm572, %v1509, %v1511
  %v1517 = vsel %vm572, %v1511, %v1513
  %v1522 = vsel %vm282, %v1514, 0.0
  %v1523 = vsel %vm283, %v1515, 0.0
  %v1524 = vsel %vm282, %v1516, 0.0
  %v1525 = vsel %vm283, %v1517, 0.0
  %v1526 = vld [vmem:[%s585] sm:$0xff]
  %v1527 = vld [vmem:[%s585 + $0x8] sm:$0xff]
  %1529 = vset.pattern.permute.xlu0 0
  %1530 = vperm.xlu0 %1529, %v1526
  %v1531 = vpop.permute.xlu0 %1530
  %1534 = vset.pattern.permute.xlu0 0
  %1535 = vperm.xlu0 %1534, %v1527
  %v1536 = vpop.permute.xlu0 %1535
  %v1538 = vmul.f32 %v1522, %v1531
  %v1539 = vmul.f32 %v1523, %v1531
  %v1540 = vmul.f32 %v1524, %v1536
  %v1541 = vmul.f32 %v1525, %v1536
  %v1542 = vadd.f32 %v1498, %v1538
  %v1543 = vadd.f32 %v1499, %v1539
  %v1544 = vadd.f32 %v1500, %v1540
  %v1545 = vadd.f32 %v1501, %v1541
  %v1546 = vld [vmem:[%s606] sm:$0xff]
  %v1547 = vld [vmem:[%s606 + $0x8] sm:$0xff]
  %1549 = vset.pattern.permute.xlu0 0
  %1550 = vperm.xlu0 %1549, %v1546
  %v1551 = vpop.permute.xlu0 %1550
  %1554 = vset.pattern.permute.xlu0 0
  %1555 = vperm.xlu0 %1554, %v1547
  %v1556 = vpop.permute.xlu0 %1555
  %v1558 = vmul.f32 %v1446, %v1551
  %v1559 = vmul.f32 %v1447, %v1551
  %v1560 = vmul.f32 %v1448, %v1551
  %v1561 = vmul.f32 %v1449, %v1556
  %v1562 = vmul.f32 %v1450, %v1556
  %v1563 = vmul.f32 %v1451, %v1556
  %1570 = vrot.lane.b32.xlu0 %v1558, 112
  %v1571 = vpop.permute.xlu0 %1570
  %1572 = vrot.lane.b32.xlu0 %v1559, 112
  %v1573 = vpop.permute.xlu0 %1572
  %1574 = vrot.lane.b32.xlu0 %v1560, 112
  %v1575 = vpop.permute.xlu0 %1574
  %1576 = vrot.lane.b32.xlu0 %v1561, 112
  %v1577 = vpop.permute.xlu0 %1576
  %1578 = vrot.lane.b32.xlu0 %v1562, 112
  %v1579 = vpop.permute.xlu0 %1578
  %1580 = vrot.lane.b32.xlu0 %v1563, 112
  %v1581 = vpop.permute.xlu0 %1580
  %v1582 = vsel %vm643, %v1571, %v1573
  %v1583 = vsel %vm643, %v1573, %v1575
  %v1584 = vsel %vm643, %v1577, %v1579
  %v1585 = vsel %vm643, %v1579, %v1581
  %v1590 = vadd.f32 %v1542, %v1582
  %v1591 = vadd.f32 %v1543, %v1583
  %v1592 = vadd.f32 %v1544, %v1584
  %v1593 = vadd.f32 %v1545, %v1585
  %1594 = vrot.lane.b32.xlu0 %v1446, 111
  %v1595 = vpop.permute.xlu0 %1594
  %1596 = vrot.lane.b32.xlu0 %v1447, 111
  %v1597 = vpop.permute.xlu0 %1596
  %1598 = vrot.lane.b32.xlu0 %v1448, 111
  %v1599 = vpop.permute.xlu0 %1598
  %1600 = vrot.lane.b32.xlu0 %v1449, 111
  %v1601 = vpop.permute.xlu0 %1600
  %1602 = vrot.lane.b32.xlu0 %v1450, 111
  %v1603 = vpop.permute.xlu0 %1602
  %1604 = vrot.lane.b32.xlu0 %v1451, 111
  %v1605 = vpop.permute.xlu0 %1604
  %v1606 = vsel %vm668, %v1595, %v1597
  %v1607 = vsel %vm668, %v1597, %v1599
  %v1608 = vsel %vm668, %v1601, %v1603
  %v1609 = vsel %vm668, %v1603, %v1605
  %v1614 = vsel %vm387, %v1606, 0.0
  %v1615 = vsel %vm388, %v1607, 0.0
  %v1616 = vsel %vm387, %v1608, 0.0
  %v1617 = vsel %vm388, %v1609, 0.0
  %v1618 = vld [vmem:[%s681] sm:$0xff]
  %v1619 = vld [vmem:[%s681 + $0x8] sm:$0xff]
  %1621 = vset.pattern.permute.xlu0 0
  %1622 = vperm.xlu0 %1621, %v1618
  %v1623 = vpop.permute.xlu0 %1622
  %1626 = vset.pattern.permute.xlu0 0
  %1627 = vperm.xlu0 %1626, %v1619
  %v1628 = vpop.permute.xlu0 %1627
  %v1630 = vmul.f32 %v1614, %v1623
  %v1631 = vmul.f32 %v1615, %v1623
  %v1632 = vmul.f32 %v1616, %v1628
  %v1633 = vmul.f32 %v1617, %v1628
  %v1634 = vadd.f32 %v1590, %v1630
  %v1635 = vadd.f32 %v1591, %v1631
  %v1636 = vadd.f32 %v1592, %v1632
  %v1637 = vadd.f32 %v1593, %v1633
  %v1638 = vld [vmem:[%s4] sm:$0xff]
  %v1639 = vld [vmem:[%s4 + $0x8] sm:$0xff]
  %1641 = vset.pattern.permute.xlu0 0
  %1642 = vperm.xlu0 %1641, %v1638
  %v1643 = vpop.permute.xlu0 %1642
  %1646 = vset.pattern.permute.xlu0 0
  %1647 = vperm.xlu0 %1646, %v1639
  %v1648 = vpop.permute.xlu0 %1647
  %v1650 = vadd.f32 %v1634, %v1643
  %v1651 = vadd.f32 %v1635, %v1643
  %v1652 = vadd.f32 %v1636, %v1648
  %v1653 = vadd.f32 %v1637, %v1648
  %v1654 = vxor.u32 %v1650, 2147483648
  %v1655 = vxor.u32 %v1651, 2147483648
  %v1656 = vxor.u32 %v1652, 2147483648
  %v1657 = vxor.u32 %v1653, 2147483648
  %v1658 = vmul.f32 %v1654, 1.442695
  %v1659 = vpow.pop %v1658
  %v1660 = vmul.f32 %v1655, 1.442695
  %v1661 = vpow.pop %v1660
  %v1662 = vmul.f32 %v1656, 1.442695
  %v1663 = vpow.pop %v1662
  %v1664 = vmul.f32 %v1657, 1.442695
  %v1665 = vpow.pop %v1664
  %v1666 = vadd.f32 %v1659, 1.0
  %v1667 = vadd.f32 %v1661, 1.0
  %v1668 = vadd.f32 %v1663, 1.0
  %v1669 = vadd.f32 %v1665, 1.0
  %v1670 = vrcp.pop %v1666
  %v1671 = vmul.f32 %v1666, %v1670
  %v1672 = vsub.f32 1.0, %v1671
  %v1673 = vmul.f32 %v1670, %v1672
  %v1674 = vadd.f32 %v1670, %v1673
  %vm1675 = vweird.f32 %v1666
  %vm1676 = vweird.f32 %v1670
  %vm1677 = vmor %vm1675, %vm1676
  %v1678 = vsel %vm1677, %v1670, %v1674
  %v1679 = vand.u32 2147483647, %v1666
  %vm1680 = vcmp.eq.f32.partialorder %v1679, 8.507059e+37
  %v1681 = vand.u32 %v1666, 2147483648
  %v1682 = vor.u32 1.1754944e-38, %v1681
  %v1683 = vsel %vm1680, %v1682, %v1678
  %v1684 = vmul.f32 1.0, %v1683
  %v1685 = vrcp.pop %v1667
  %v1686 = vmul.f32 %v1667, %v1685
  %v1687 = vsub.f32 1.0, %v1686
  %v1688 = vmul.f32 %v1685, %v1687
  %v1689 = vadd.f32 %v1685, %v1688
  %vm1690 = vweird.f32 %v1667
  %vm1691 = vweird.f32 %v1685
  %vm1692 = vmor %vm1690, %vm1691
  %v1693 = vsel %vm1692, %v1685, %v1689
  %v1694 = vand.u32 2147483647, %v1667
  %vm1695 = vcmp.eq.f32.partialorder %v1694, 8.507059e+37
  %v1696 = vand.u32 %v1667, 2147483648
  %v1697 = vor.u32 1.1754944e-38, %v1696
  %v1698 = vsel %vm1695, %v1697, %v1693
  %v1699 = vmul.f32 1.0, %v1698
  %v1700 = vrcp.pop %v1668
  %v1701 = vmul.f32 %v1668, %v1700
  %v1702 = vsub.f32 1.0, %v1701
  %v1703 = vmul.f32 %v1700, %v1702
  %v1704 = vadd.f32 %v1700, %v1703
  %vm1705 = vweird.f32 %v1668
  %vm1706 = vweird.f32 %v1700
  %vm1707 = vmor %vm1705, %vm1706
  %v1708 = vsel %vm1707, %v1700, %v1704
  %v1709 = vand.u32 2147483647, %v1668
  %vm1710 = vcmp.eq.f32.partialorder %v1709, 8.507059e+37
  %v1711 = vand.u32 %v1668, 2147483648
  %v1712 = vor.u32 1.1754944e-38, %v1711
  %v1713 = vsel %vm1710, %v1712, %v1708
  %v1714 = vmul.f32 1.0, %v1713
  %v1715 = vrcp.pop %v1669
  %v1716 = vmul.f32 %v1669, %v1715
  %v1717 = vsub.f32 1.0, %v1716
  %v1718 = vmul.f32 %v1715, %v1717
  %v1719 = vadd.f32 %v1715, %v1718
  %vm1720 = vweird.f32 %v1669
  %vm1721 = vweird.f32 %v1715
  %vm1722 = vmor %vm1720, %vm1721
  %v1723 = vsel %vm1722, %v1715, %v1719
  %v1724 = vand.u32 2147483647, %v1669
  %vm1725 = vcmp.eq.f32.partialorder %v1724, 8.507059e+37
  %v1726 = vand.u32 %v1669, 2147483648
  %v1727 = vor.u32 1.1754944e-38, %v1726
  %v1728 = vsel %vm1725, %v1727, %v1723
  %v1729 = vmul.f32 1.0, %v1728
  %v1730 = vmul.f32 %v1650, %v1684
  %v1731 = vmul.f32 %v1651, %v1699
  %v1732 = vmul.f32 %v1652, %v1714
  %v1733 = vmul.f32 %v1653, %v1729
  %v1734 = vld [vmem:[%s5] sm:$0xf]
  %1736 = vset.pattern.permute.xlu0 0
  %1737 = vperm.xlu0 %1736, %v1734
  %v1738 = vpop.permute.xlu0 %1737
  %v1740 = vperm.slane %v1730, 0
  %v1741 = vperm.slane %v1731, 0
  %v1742 = vmul.f32 %v1738, %v1740
  %v1743 = vmul.f32 %v1738, %v1741
  %v1744 = vadd.f32 %v1742, 0.0
  %v1745 = vadd.f32 %v1743, 0.0
  %v1746 = vld [vmem:[%s810] sm:$0xf]
  %1748 = vset.pattern.permute.xlu0 0
  %1749 = vperm.xlu0 %1748, %v1746
  %v1750 = vpop.permute.xlu0 %1749
  %v1752 = vperm.slane %v1730, 1
  %v1753 = vperm.slane %v1731, 1
  %v1754 = vmul.f32 %v1750, %v1752
  %v1755 = vmul.f32 %v1750, %v1753
  %v1756 = vadd.f32 %v1744, %v1754
  %v1757 = vadd.f32 %v1745, %v1755
  %v1758 = vld [vmem:[%s823] sm:$0xf]
  %1760 = vset.pattern.permute.xlu0 0
  %1761 = vperm.xlu0 %1760, %v1758
  %v1762 = vpop.permute.xlu0 %1761
  %v1764 = vperm.slane %v1730, 2
  %v1765 = vperm.slane %v1731, 2
  %v1766 = vmul.f32 %v1762, %v1764
  %v1767 = vmul.f32 %v1762, %v1765
  %v1768 = vadd.f32 %v1756, %v1766
  %v1769 = vadd.f32 %v1757, %v1767
  %v1770 = vld [vmem:[%s836] sm:$0xf]
  %1772 = vset.pattern.permute.xlu0 0
  %1773 = vperm.xlu0 %1772, %v1770
  %v1774 = vpop.permute.xlu0 %1773
  %v1776 = vperm.slane %v1730, 3
  %v1777 = vperm.slane %v1731, 3
  %v1778 = vmul.f32 %v1774, %v1776
  %v1779 = vmul.f32 %v1774, %v1777
  %v1780 = vadd.f32 %v1768, %v1778
  %v1781 = vadd.f32 %v1769, %v1779
  %v1782 = vld [vmem:[%s849] sm:$0xf]
  %1784 = vset.pattern.permute.xlu0 0
  %1785 = vperm.xlu0 %1784, %v1782
  %v1786 = vpop.permute.xlu0 %1785
  %v1788 = vperm.slane %v1730, 4
  %v1789 = vperm.slane %v1731, 4
  %v1790 = vmul.f32 %v1786, %v1788
  %v1791 = vmul.f32 %v1786, %v1789
  %v1792 = vadd.f32 %v1780, %v1790
  %v1793 = vadd.f32 %v1781, %v1791
  %v1794 = vld [vmem:[%s862] sm:$0xf]
  %1796 = vset.pattern.permute.xlu0 0
  %1797 = vperm.xlu0 %1796, %v1794
  %v1798 = vpop.permute.xlu0 %1797
  %v1800 = vperm.slane %v1730, 5
  %v1801 = vperm.slane %v1731, 5
  %v1802 = vmul.f32 %v1798, %v1800
  %v1803 = vmul.f32 %v1798, %v1801
  %v1804 = vadd.f32 %v1792, %v1802
  %v1805 = vadd.f32 %v1793, %v1803
  %v1806 = vld [vmem:[%s875] sm:$0xf]
  %1808 = vset.pattern.permute.xlu0 0
  %1809 = vperm.xlu0 %1808, %v1806
  %v1810 = vpop.permute.xlu0 %1809
  %v1812 = vperm.slane %v1730, 6
  %v1813 = vperm.slane %v1731, 6
  %v1814 = vmul.f32 %v1810, %v1812
  %v1815 = vmul.f32 %v1810, %v1813
  %v1816 = vadd.f32 %v1804, %v1814
  %v1817 = vadd.f32 %v1805, %v1815
  %v1818 = vld [vmem:[%s888] sm:$0xf]
  %1820 = vset.pattern.permute.xlu0 0
  %1821 = vperm.xlu0 %1820, %v1818
  %v1822 = vpop.permute.xlu0 %1821
  %v1824 = vperm.slane %v1730, 7
  %v1825 = vperm.slane %v1731, 7
  %v1826 = vmul.f32 %v1822, %v1824
  %v1827 = vmul.f32 %v1822, %v1825
  %v1828 = vadd.f32 %v1816, %v1826
  %v1829 = vadd.f32 %v1817, %v1827
  %v1830 = vld [vmem:[%s901] sm:$0xf]
  %1832 = vset.pattern.permute.xlu0 0
  %1833 = vperm.xlu0 %1832, %v1830
  %v1834 = vpop.permute.xlu0 %1833
  %v1836 = vperm.slane %v1732, 0
  %v1837 = vperm.slane %v1733, 0
  %v1838 = vmul.f32 %v1834, %v1836
  %v1839 = vmul.f32 %v1834, %v1837
  %v1840 = vadd.f32 %v1828, %v1838
  %v1841 = vadd.f32 %v1829, %v1839
  %v1842 = vld [vmem:[%s914] sm:$0xf]
  %1844 = vset.pattern.permute.xlu0 0
  %1845 = vperm.xlu0 %1844, %v1842
  %v1846 = vpop.permute.xlu0 %1845
  %v1848 = vperm.slane %v1732, 1
  %v1849 = vperm.slane %v1733, 1
  %v1850 = vmul.f32 %v1846, %v1848
  %v1851 = vmul.f32 %v1846, %v1849
  %v1852 = vadd.f32 %v1840, %v1850
  %v1853 = vadd.f32 %v1841, %v1851
  %v1854 = vld [vmem:[%s927] sm:$0xf]
  %1856 = vset.pattern.permute.xlu0 0
  %1857 = vperm.xlu0 %1856, %v1854
  %v1858 = vpop.permute.xlu0 %1857
  %v1860 = vperm.slane %v1732, 2
  %v1861 = vperm.slane %v1733, 2
  %v1862 = vmul.f32 %v1858, %v1860
  %v1863 = vmul.f32 %v1858, %v1861
  %v1864 = vadd.f32 %v1852, %v1862
  %v1865 = vadd.f32 %v1853, %v1863
  %v1866 = vld [vmem:[%s940] sm:$0xf]
  %1868 = vset.pattern.permute.xlu0 0
  %1869 = vperm.xlu0 %1868, %v1866
  %v1870 = vpop.permute.xlu0 %1869
  %v1872 = vperm.slane %v1732, 3
  %v1873 = vperm.slane %v1733, 3
  %v1874 = vmul.f32 %v1870, %v1872
  %v1875 = vmul.f32 %v1870, %v1873
  %v1876 = vadd.f32 %v1864, %v1874
  %v1877 = vadd.f32 %v1865, %v1875
  %v1878 = vld [vmem:[%s953] sm:$0xf]
  %1880 = vset.pattern.permute.xlu0 0
  %1881 = vperm.xlu0 %1880, %v1878
  %v1882 = vpop.permute.xlu0 %1881
  %v1884 = vperm.slane %v1732, 4
  %v1885 = vperm.slane %v1733, 4
  %v1886 = vmul.f32 %v1882, %v1884
  %v1887 = vmul.f32 %v1882, %v1885
  %v1888 = vadd.f32 %v1876, %v1886
  %v1889 = vadd.f32 %v1877, %v1887
  %v1890 = vld [vmem:[%s966] sm:$0xf]
  %1892 = vset.pattern.permute.xlu0 0
  %1893 = vperm.xlu0 %1892, %v1890
  %v1894 = vpop.permute.xlu0 %1893
  %v1896 = vperm.slane %v1732, 5
  %v1897 = vperm.slane %v1733, 5
  %v1898 = vmul.f32 %v1894, %v1896
  %v1899 = vmul.f32 %v1894, %v1897
  %v1900 = vadd.f32 %v1888, %v1898
  %v1901 = vadd.f32 %v1889, %v1899
  %v1902 = vld [vmem:[%s979] sm:$0xf]
  %1904 = vset.pattern.permute.xlu0 0
  %1905 = vperm.xlu0 %1904, %v1902
  %v1906 = vpop.permute.xlu0 %1905
  %v1908 = vperm.slane %v1732, 6
  %v1909 = vperm.slane %v1733, 6
  %v1910 = vmul.f32 %v1906, %v1908
  %v1911 = vmul.f32 %v1906, %v1909
  %v1912 = vadd.f32 %v1900, %v1910
  %v1913 = vadd.f32 %v1901, %v1911
  %v1914 = vld [vmem:[%s992] sm:$0xf]
  %1916 = vset.pattern.permute.xlu0 0
  %1917 = vperm.xlu0 %1916, %v1914
  %v1918 = vpop.permute.xlu0 %1917
  %v1920 = vperm.slane %v1732, 7
  %v1921 = vperm.slane %v1733, 7
  %v1922 = vmul.f32 %v1918, %v1920
  %v1923 = vmul.f32 %v1918, %v1921
  %v1924 = vadd.f32 %v1912, %v1922
  %v1925 = vadd.f32 %v1913, %v1923
  %v1926 = vld [vmem:[%s6] sm:$0xf]
  %1928 = vset.pattern.permute.xlu0 0
  %1929 = vperm.xlu0 %1928, %v1926
  %v1930 = vpop.permute.xlu0 %1929
  %v1932 = vadd.f32 %v1924, %v1930
  %v1933 = vadd.f32 %v1925, %v1930
  %1934 = vst [vmem:[#allocation1] ss:$2 sm:$0xff] %v1028
  %v1935 = vld.sshfl [vmem:[#allocation1] sm:$0xff pattern:$0x75316420]
  %v1936 = vld.sshfl [vmem:[#allocation1 + $0x8] sm:$0xff pattern:$0x75316420]
  %v1939 = vadd.f32 %v1932, %v1935
  %v1940 = vadd.f32 %v1933, %v1936
  %v1943 = vrot.slane %v1940, 4
  %v1944 = vsel %vm1023, %v1939, %v1943
  %s1946 = scalar_lea.vmem %s7, 8
  %1947 = vst [vmem:[%s1946] sm:$0xff] %v1944
  // Predicated region
  $region30: #{mbconv_forward.1} parent=0 // pred_check
    _
  $region31: #{mbconv_forward.1} parent=0 // pred_check_branch
    %1949 = sbr.rel (0) target = $region33
  $region32: #{mbconv_forward.1} parent=0 // pred_region
    _
  $region33: #{mbconv_forward.1} parent=0 // pred_fallthru
    _
  // Predicated region
  $region34: #{mbconv_forward.1} parent=0 // pred_check
    _
  $region35: #{mbconv_forward.1} parent=0 // pred_check_branch
    %1951 = sbr.rel (0) target = $region37
  $region36: #{mbconv_forward.1} parent=0 // pred_region
    _
  $region37: #{mbconv_forward.1} parent=0 // pred_fallthru
    _

</llo_original>
